<compile_context>
chip_gen: v5e
topology: v5e:2x2
jax: 0.10.0
libtpu: 0.0.40
codegen_flags: <defaults>
</compile_context>

<pallas_src>
import jax
import jax.numpy as jnp
from jax.experimental import pallas as pl
from jax.experimental.pallas import tpu as pltpu
from functools import partial

EPS = 1e-5  # nn.LayerNorm default eps


def self_attention_kernel(x_ref, gamma_ref, beta_ref, wqkv_ref, bqkv_ref,
                          wproj_ref, bproj_ref, o_ref, *, num_heads):
    bt, c, n = x_ref.shape          # (block_b, C, N) native-NCHW block
    d = c // num_heads
    r = bt * n                      # fused row count for the big matmuls

    # ---- on-chip (C,N) -> (N,C) transpose (XLU; HBM stays native NCHW) ----
    if bt == 1:
        x2 = jnp.transpose(x_ref[0], (1, 0))                       # (N, C)
    else:
        x2 = jnp.transpose(x_ref[...], (0, 2, 1)).reshape(r, c)    # (Bt*N, C)

    # ---- LayerNorm over channels (two-pass variance, f32) ----
    mean = jnp.mean(x2, axis=-1, keepdims=True)
    xc = x2 - mean
    var = jnp.mean(xc * xc, axis=-1, keepdims=True)
    xn = xc * jax.lax.rsqrt(var + EPS) * gamma_ref[...] + beta_ref[...]

    # ---- fused QKV: one (R,C)@(C,3C) MXU matmul (bf16 operands, f32 acc) ----
    # softmax scale already folded into the Q columns of wqkv / bqkv
    qkv = jnp.dot(xn.astype(jnp.bfloat16), wqkv_ref[...],
                  preferred_element_type=jnp.float32) + bqkv_ref[...]
    qkv = qkv.astype(jnp.bfloat16)            # cast once at production

    # ---- head-major relayout via lane slices + stack (no per-head matmuls) ----
    def head_major(col0):
        hs = [qkv[:, col0 + h * d: col0 + (h + 1) * d] for h in range(num_heads)]
        t = jnp.stack(hs, axis=0)                       # (H, R, d)
        return t.reshape(num_heads * bt, n, d)          # (G, N, d); G = (h, b)

    q = head_major(0)
    k = head_major(c)
    v = head_major(2 * c)

    # ---- batched attention over groups; normalize AFTER the PV matmul ----
    s = jnp.einsum('gnd,gmd->gnm', q, k,
                   preferred_element_type=jnp.float32)              # (G, N, N)
    m = jnp.max(s, axis=-1, keepdims=True)
    p = jnp.exp(s - m)
    l = jnp.sum(p, axis=-1, keepdims=True)
    ctx = jnp.einsum('gnm,gmd->gnd', p.astype(jnp.bfloat16), v,
                     preferred_element_type=jnp.float32)            # (G, N, d)
    ctx = ctx * pl.reciprocal(l, approx=True)

    # ---- merge heads along lanes + single (R,C)@(C,C) output projection ----
    cols = [ctx[h * bt:(h + 1) * bt].reshape(r, d) for h in range(num_heads)]
    ctx2 = jnp.concatenate(cols, axis=-1).astype(jnp.bfloat16)      # (R, C)
    out = jnp.dot(ctx2, wproj_ref[...],
                  preferred_element_type=jnp.float32) + bproj_ref[...]

    # ---- residual + transpose back to native (C, N) layout ----
    y = x2 + out                                                    # (R, C) f32
    if bt == 1:
        o_ref[0] = jnp.transpose(y, (1, 0)).astype(o_ref.dtype)
    else:
        o_ref[...] = jnp.transpose(y.reshape(bt, n, c),
                                   (0, 2, 1)).astype(o_ref.dtype)


def _pick_block_b(B, N):
    """Batch elements per grid step: fill up to 256 MXU rows, but keep >=2
    grid steps when possible so v7x's two TensorCores both get work."""
    bt = 1
    while (bt * 2 <= B and B % (bt * 2) == 0
           and bt * 2 * N <= 256 and B // (bt * 2) >= 2):
        bt *= 2
    return bt


def prepare_params(params, num_heads):
    """One-time weight relayout / scale-fold / bf16 cast (hoisted off the
    per-call path)."""
    C = params["gamma"].shape[0]
    assert C % num_heads == 0
    scale = 1.0 / (C ** 0.5)           # PyTorch module divides scores by sqrt(C)
    col_scale = jnp.concatenate([jnp.full((C,), scale, jnp.float32),
                                 jnp.ones((2 * C,), jnp.float32)])
    return {
        "gamma": params["gamma"].reshape(1, C).astype(jnp.float32),
        "beta": params["beta"].reshape(1, C).astype(jnp.float32),
        # fold softmax scale into Q columns; bf16 MXU operands, f32 biases
        "wqkv": (params["wqkv"] * col_scale[None, :]).astype(jnp.bfloat16),
        "bqkv": (params["bqkv"] * col_scale).reshape(1, 3 * C).astype(jnp.float32),
        "wproj": params["wproj"].astype(jnp.bfloat16),
        "bproj": params["bproj"].reshape(1, C).astype(jnp.float32),
    }


def self_attention(x_nchw, prepped, num_heads, block_b=None):
    B, C, H, W = x_nchw.shape
    N = H * W
    if block_b is None:
        block_b = _pick_block_b(B, N)
    assert B % block_b == 0

    # Free reshape: HBM stays in native NCHW order; transpose happens on-chip.
    x_cn = x_nchw.reshape(B, C, N)

    kernel = partial(self_attention_kernel, num_heads=num_heads)

    def full(shape):
        return pl.BlockSpec(shape, lambda b, _n=len(shape): (0,) * _n)

    out_cn = pl.pallas_call(
        kernel,
        out_shape=jax.ShapeDtypeStruct((B, C, N), x_nchw.dtype),
        grid_spec=pltpu.PrefetchScalarGridSpec(
            num_scalar_prefetch=0,
            grid=(B // block_b,),
            in_specs=[
                pl.BlockSpec((block_b, C, N), lambda b: (b, 0, 0)),
                full((1, C)), full((1, C)),
                full((C, 3 * C)), full((1, 3 * C)),
                full((C, C)), full((1, C)),
            ],
            out_specs=pl.BlockSpec((block_b, C, N), lambda b: (b, 0, 0)),
        ),
        compiler_params=pltpu.CompilerParams(
            dimension_semantics=("parallel",),
            vmem_limit_bytes=32 * 1024 * 1024,
        ),
    )(x_cn, prepped["gamma"], prepped["beta"], prepped["wqkv"],
      prepped["bqkv"], prepped["wproj"], prepped["bproj"])

    return out_cn.reshape(B, C, H, W)


def reference(x_nchw, params, num_heads):
    # Pure-JAX f32 reference mirroring the PyTorch forward.
    B, C, H, W = x_nchw.shape
    N = H * W
    x_ = jnp.transpose(x_nchw, (0, 2, 3, 1)).reshape(B, N, C)
    mean = jnp.mean(x_, axis=-1, keepdims=True)
    var = jnp.mean((x_ - mean) ** 2, axis=-1, keepdims=True)
    xn = (x_ - mean) / jnp.sqrt(var + EPS) * params["gamma"] + params["beta"]
    qkv = xn @ params["wqkv"] + params["bqkv"]
    q, k, v = jnp.split(qkv, 3, axis=-1)
    d = C // num_heads
    q = q.reshape(B, N, num_heads, d).transpose(0, 2, 1, 3)
    k = k.reshape(B, N, num_heads, d).transpose(0, 2, 1, 3)
    v = v.reshape(B, N, num_heads, d).transpose(0, 2, 1, 3)
    attn = jax.nn.softmax(q @ jnp.swapaxes(k, -1, -2) / (C ** 0.5), axis=-1)
    out = (attn @ v).transpose(0, 2, 1, 3).reshape(B, N, C)
    out = out @ params["wproj"] + params["bproj"]
    out = jnp.transpose(out.reshape(B, H, W, C), (0, 3, 1, 2))
    return x_nchw + out


if __name__ == "__main__":
    B, C, H, W = 2, 32, 8, 8
    num_heads = 4

    key = jax.random.PRNGKey(0)
    kx, kq, kbq, kp, kbp = jax.random.split(key, 5)

    x = jax.random.normal(kx, (B, C, H, W), dtype=jnp.float32)

    # Parameters stored in (in, out) form so the kernel does x @ W + b.
    params = {
        "gamma": jnp.ones((C,), jnp.float32),
        "beta": jnp.zeros((C,), jnp.float32),
        "wqkv": jax.random.normal(kq, (C, 3 * C), jnp.float32) * 0.05,
        "bqkv": jax.random.normal(kbq, (3 * C,), jnp.float32) * 0.05,
        "wproj": jax.random.normal(kp, (C, C), jnp.float32) * 0.05,
        "bproj": jax.random.normal(kbp, (C,), jnp.float32) * 0.05,
    }

    prepped = prepare_params(params, num_heads)          # one-time weight prep
    fn = jax.jit(partial(self_attention, num_heads=num_heads))

    out = jax.block_until_ready(fn(x, prepped))

    ref = reference(x, params, num_heads)
    assert out.shape == (B, C, H, W)
    # bf16 MXU operands (f32 accumulation) + approx reciprocal => looser tol
    assert jnp.allclose(out, ref, atol=2e-2, rtol=2e-2), "mismatch vs reference"

    print("KERNEL_OK")
</pallas_src>

<mosaic_0001>
module attributes {stable_mosaic.version = 11 : i64} {
  func.func @self_attention_kernel(%arg0: i32, %arg1: memref<1x32x64xf32, #tpu.memory_space<vmem>>, %arg2: memref<1x32xf32, #tpu.memory_space<vmem>>, %arg3: memref<1x32xf32, #tpu.memory_space<vmem>>, %arg4: memref<32x96xbf16, #tpu.memory_space<vmem>>, %arg5: memref<1x96xf32, #tpu.memory_space<vmem>>, %arg6: memref<32x32xbf16, #tpu.memory_space<vmem>>, %arg7: memref<1x32xf32, #tpu.memory_space<vmem>>, %arg8: memref<1x32x64xf32, #tpu.memory_space<vmem>>) attributes {dimension_semantics = [#tpu.dimension_semantics<parallel>], iteration_bounds = array<i64: 2>, scalar_prefetch = 0 : i64, scratch_operands = 0 : i64, tpu.core_type = #tpu.core_type<tc>, window_params = [{transform_indices = @transform_0, window_bounds = array<i64: 1, 32, 64>}, {pipeline_mode = #tpu.pipeline_mode<synchronous>, transform_indices = @transform_1, window_bounds = array<i64: 1, 32>}, {pipeline_mode = #tpu.pipeline_mode<synchronous>, transform_indices = @transform_2, window_bounds = array<i64: 1, 32>}, {pipeline_mode = #tpu.pipeline_mode<synchronous>, transform_indices = @transform_3, window_bounds = array<i64: 32, 96>}, {pipeline_mode = #tpu.pipeline_mode<synchronous>, transform_indices = @transform_4, window_bounds = array<i64: 1, 96>}, {pipeline_mode = #tpu.pipeline_mode<synchronous>, transform_indices = @transform_5, window_bounds = array<i64: 32, 32>}, {pipeline_mode = #tpu.pipeline_mode<synchronous>, transform_indices = @transform_6, window_bounds = array<i64: 1, 32>}, {transform_indices = @transform_7, window_bounds = array<i64: 1, 32, 64>}]} {
    %c0 = arith.constant 0 : index
    %c0_0 = arith.constant 0 : index
    %c0_1 = arith.constant 0 : index
    %0 = vector.load %arg1[%c0, %c0_0, %c0_1] : memref<1x32x64xf32, #tpu.memory_space<vmem>>, vector<1x32x64xf32>
    %1 = vector.shape_cast %0 : vector<1x32x64xf32> to vector<32x64xf32>
    %2 = tpu.transpose %1, [1, 0] : vector<32x64xf32> -> vector<64x32xf32>
    %cst = arith.constant dense<0.000000e+00> : vector<64xf32>
    %3 = vector.multi_reduction <add>, %2, %cst [1] : vector<64x32xf32> to vector<64xf32>
    %4 = vector.shape_cast %3 : vector<64xf32> to vector<64x1xf32>
    %cst_2 = arith.constant 3.200000e+01 : f32
    %5 = vector.broadcast %cst_2 : f32 to vector<64x1xf32>
    %6 = arith.divf %4, %5 : vector<64x1xf32>
    %7 = vector.broadcast %6 : vector<64x1xf32> to vector<64x32xf32>
    %8 = arith.subf %2, %7 : vector<64x32xf32>
    %9 = arith.mulf %8, %8 : vector<64x32xf32>
    %cst_3 = arith.constant dense<0.000000e+00> : vector<64xf32>
    %10 = vector.multi_reduction <add>, %9, %cst_3 [1] : vector<64x32xf32> to vector<64xf32>
    %11 = vector.shape_cast %10 : vector<64xf32> to vector<64x1xf32>
    %cst_4 = arith.constant 3.200000e+01 : f32
    %12 = vector.broadcast %cst_4 : f32 to vector<64x1xf32>
    %13 = arith.divf %11, %12 : vector<64x1xf32>
    %cst_5 = arith.constant 9.99999974E-6 : f32
    %14 = vector.broadcast %cst_5 : f32 to vector<64x1xf32>
    %15 = arith.addf %13, %14 : vector<64x1xf32>
    %16 = math.rsqrt %15 : vector<64x1xf32>
    %17 = vector.broadcast %16 : vector<64x1xf32> to vector<64x32xf32>
    %18 = arith.mulf %8, %17 : vector<64x32xf32>
    %c0_6 = arith.constant 0 : index
    %c0_7 = arith.constant 0 : index
    %19 = vector.load %arg2[%c0_6, %c0_7] : memref<1x32xf32, #tpu.memory_space<vmem>>, vector<1x32xf32>
    %20 = vector.broadcast %19 : vector<1x32xf32> to vector<64x32xf32>
    %21 = arith.mulf %18, %20 : vector<64x32xf32>
    %c0_8 = arith.constant 0 : index
    %c0_9 = arith.constant 0 : index
    %22 = vector.load %arg3[%c0_8, %c0_9] : memref<1x32xf32, #tpu.memory_space<vmem>>, vector<1x32xf32>
    %23 = vector.broadcast %22 : vector<1x32xf32> to vector<64x32xf32>
    %24 = arith.addf %21, %23 : vector<64x32xf32>
    %25 = arith.truncf %24 : vector<64x32xf32> to vector<64x32xbf16>
    %c0_10 = arith.constant 0 : index
    %c0_11 = arith.constant 0 : index
    %26 = vector.load %arg4[%c0_10, %c0_11] : memref<32x96xbf16, #tpu.memory_space<vmem>>, vector<32x96xbf16>
    %cst_12 = arith.constant dense<0.000000e+00> : vector<64x96xf32>
    %27 = tpu.matmul %25, %26, %cst_12 {dimension_numbers = #tpu.dot_dimension_numbers<[1], [0], [0], [1], [0, 0, 1, 1], [], []>} : vector<64x32xbf16>, vector<32x96xbf16>, vector<64x96xf32> -> vector<64x96xf32>
    %c0_13 = arith.constant 0 : index
    %c0_14 = arith.constant 0 : index
    %28 = vector.load %arg5[%c0_13, %c0_14] : memref<1x96xf32, #tpu.memory_space<vmem>>, vector<1x96xf32>
    %29 = vector.broadcast %28 : vector<1x96xf32> to vector<64x96xf32>
    %30 = arith.addf %27, %29 : vector<64x96xf32>
    %31 = arith.truncf %30 : vector<64x96xf32> to vector<64x96xbf16>
    %32 = vector.extract_strided_slice %31 {offsets = [0, 0], sizes = [64, 8], strides = [1, 1]} : vector<64x96xbf16> to vector<64x8xbf16>
    %33 = vector.extract_strided_slice %31 {offsets = [0, 8], sizes = [64, 8], strides = [1, 1]} : vector<64x96xbf16> to vector<64x8xbf16>
    %34 = vector.extract_strided_slice %31 {offsets = [0, 16], sizes = [64, 8], strides = [1, 1]} : vector<64x96xbf16> to vector<64x8xbf16>
    %35 = vector.extract_strided_slice %31 {offsets = [0, 24], sizes = [64, 8], strides = [1, 1]} : vector<64x96xbf16> to vector<64x8xbf16>
    %36 = vector.shape_cast %32 : vector<64x8xbf16> to vector<1x64x8xbf16>
    %37 = vector.shape_cast %33 : vector<64x8xbf16> to vector<1x64x8xbf16>
    %38 = vector.shape_cast %34 : vector<64x8xbf16> to vector<1x64x8xbf16>
    %39 = vector.shape_cast %35 : vector<64x8xbf16> to vector<1x64x8xbf16>
    %40 = tpu.concatenate %36, %37, %38, %39 in 0 : vector<1x64x8xbf16>, vector<1x64x8xbf16>, vector<1x64x8xbf16>, vector<1x64x8xbf16> -> vector<4x64x8xbf16>
    %41 = vector.extract_strided_slice %31 {offsets = [0, 32], sizes = [64, 8], strides = [1, 1]} : vector<64x96xbf16> to vector<64x8xbf16>
    %42 = vector.extract_strided_slice %31 {offsets = [0, 40], sizes = [64, 8], strides = [1, 1]} : vector<64x96xbf16> to vector<64x8xbf16>
    %43 = vector.extract_strided_slice %31 {offsets = [0, 48], sizes = [64, 8], strides = [1, 1]} : vector<64x96xbf16> to vector<64x8xbf16>
    %44 = vector.extract_strided_slice %31 {offsets = [0, 56], sizes = [64, 8], strides = [1, 1]} : vector<64x96xbf16> to vector<64x8xbf16>
    %45 = vector.shape_cast %41 : vector<64x8xbf16> to vector<1x64x8xbf16>
    %46 = vector.shape_cast %42 : vector<64x8xbf16> to vector<1x64x8xbf16>
    %47 = vector.shape_cast %43 : vector<64x8xbf16> to vector<1x64x8xbf16>
    %48 = vector.shape_cast %44 : vector<64x8xbf16> to vector<1x64x8xbf16>
    %49 = tpu.concatenate %45, %46, %47, %48 in 0 : vector<1x64x8xbf16>, vector<1x64x8xbf16>, vector<1x64x8xbf16>, vector<1x64x8xbf16> -> vector<4x64x8xbf16>
    %50 = vector.extract_strided_slice %31 {offsets = [0, 64], sizes = [64, 8], strides = [1, 1]} : vector<64x96xbf16> to vector<64x8xbf16>
    %51 = vector.extract_strided_slice %31 {offsets = [0, 72], sizes = [64, 8], strides = [1, 1]} : vector<64x96xbf16> to vector<64x8xbf16>
    %52 = vector.extract_strided_slice %31 {offsets = [0, 80], sizes = [64, 8], strides = [1, 1]} : vector<64x96xbf16> to vector<64x8xbf16>
    %53 = vector.extract_strided_slice %31 {offsets = [0, 88], sizes = [64, 8], strides = [1, 1]} : vector<64x96xbf16> to vector<64x8xbf16>
    %54 = vector.shape_cast %50 : vector<64x8xbf16> to vector<1x64x8xbf16>
    %55 = vector.shape_cast %51 : vector<64x8xbf16> to vector<1x64x8xbf16>
    %56 = vector.shape_cast %52 : vector<64x8xbf16> to vector<1x64x8xbf16>
    %57 = vector.shape_cast %53 : vector<64x8xbf16> to vector<1x64x8xbf16>
    %58 = tpu.concatenate %54, %55, %56, %57 in 0 : vector<1x64x8xbf16>, vector<1x64x8xbf16>, vector<1x64x8xbf16>, vector<1x64x8xbf16> -> vector<4x64x8xbf16>
    "tpu.trace_start"() <{level = 10 : i32, message = "gnd,gmd->gnm"}> : () -> ()
    %cst_15 = arith.constant dense<0.000000e+00> : vector<4x64x64xf32>
    %59 = tpu.matmul %40, %49, %cst_15 {dimension_numbers = #tpu.dot_dimension_numbers<[2], [2], [1], [1], [0, 0, 0, 1, 1, 1], [0], [0]>} : vector<4x64x8xbf16>, vector<4x64x8xbf16>, vector<4x64x64xf32> -> vector<4x64x64xf32>
    "tpu.trace_stop"() : () -> ()
    %cst_16 = arith.constant dense<0xFF800000> : vector<4x64xf32>
    %60 = vector.multi_reduction <maximumf>, %59, %cst_16 [2] : vector<4x64x64xf32> to vector<4x64xf32>
    %61 = vector.shape_cast %60 : vector<4x64xf32> to vector<4x64x1xf32>
    %62 = vector.broadcast %61 : vector<4x64x1xf32> to vector<4x64x64xf32>
    %63 = arith.subf %59, %62 : vector<4x64x64xf32>
    %64 = math.exp %63 : vector<4x64x64xf32>
    %cst_17 = arith.constant dense<0.000000e+00> : vector<4x64xf32>
    %65 = vector.multi_reduction <add>, %64, %cst_17 [2] : vector<4x64x64xf32> to vector<4x64xf32>
    %66 = vector.shape_cast %65 : vector<4x64xf32> to vector<4x64x1xf32>
    %67 = arith.truncf %64 : vector<4x64x64xf32> to vector<4x64x64xbf16>
    "tpu.trace_start"() <{level = 10 : i32, message = "gnm,gmd->gnd"}> : () -> ()
    %cst_18 = arith.constant dense<0.000000e+00> : vector<4x64x8xf32>
    %68 = tpu.matmul %67, %58, %cst_18 {dimension_numbers = #tpu.dot_dimension_numbers<[2], [1], [1], [2], [0, 0, 0, 1, 1, 2], [0], [0]>} : vector<4x64x64xbf16>, vector<4x64x8xbf16>, vector<4x64x8xf32> -> vector<4x64x8xf32>
    "tpu.trace_stop"() : () -> ()
    %69 = tpu.reciprocal %66 {approx = true} : vector<4x64x1xf32> -> vector<4x64x1xf32>
    %70 = vector.broadcast %69 : vector<4x64x1xf32> to vector<4x64x8xf32>
    %71 = arith.mulf %68, %70 : vector<4x64x8xf32>
    %72 = vector.extract_strided_slice %71 {offsets = [0, 0, 0], sizes = [1, 64, 8], strides = [1, 1, 1]} : vector<4x64x8xf32> to vector<1x64x8xf32>
    %73 = vector.shape_cast %72 : vector<1x64x8xf32> to vector<64x8xf32>
    %74 = vector.extract_strided_slice %71 {offsets = [1, 0, 0], sizes = [1, 64, 8], strides = [1, 1, 1]} : vector<4x64x8xf32> to vector<1x64x8xf32>
    %75 = vector.shape_cast %74 : vector<1x64x8xf32> to vector<64x8xf32>
    %76 = vector.extract_strided_slice %71 {offsets = [2, 0, 0], sizes = [1, 64, 8], strides = [1, 1, 1]} : vector<4x64x8xf32> to vector<1x64x8xf32>
    %77 = vector.shape_cast %76 : vector<1x64x8xf32> to vector<64x8xf32>
    %78 = vector.extract_strided_slice %71 {offsets = [3, 0, 0], sizes = [1, 64, 8], strides = [1, 1, 1]} : vector<4x64x8xf32> to vector<1x64x8xf32>
    %79 = vector.shape_cast %78 : vector<1x64x8xf32> to vector<64x8xf32>
    %80 = tpu.concatenate %73, %75, %77, %79 in 1 : vector<64x8xf32>, vector<64x8xf32>, vector<64x8xf32>, vector<64x8xf32> -> vector<64x32xf32>
    %81 = arith.truncf %80 : vector<64x32xf32> to vector<64x32xbf16>
    %c0_19 = arith.constant 0 : index
    %c0_20 = arith.constant 0 : index
    %82 = vector.load %arg6[%c0_19, %c0_20] : memref<32x32xbf16, #tpu.memory_space<vmem>>, vector<32x32xbf16>
    %cst_21 = arith.constant dense<0.000000e+00> : vector<64x32xf32>
    %83 = tpu.matmul %81, %82, %cst_21 {dimension_numbers = #tpu.dot_dimension_numbers<[1], [0], [0], [1], [0, 0, 1, 1], [], []>} : vector<64x32xbf16>, vector<32x32xbf16>, vector<64x32xf32> -> vector<64x32xf32>
    %c0_22 = arith.constant 0 : index
    %c0_23 = arith.constant 0 : index
    %84 = vector.load %arg7[%c0_22, %c0_23] : memref<1x32xf32, #tpu.memory_space<vmem>>, vector<1x32xf32>
    %85 = vector.broadcast %84 : vector<1x32xf32> to vector<64x32xf32>
    %86 = arith.addf %83, %85 : vector<64x32xf32>
    %87 = arith.addf %2, %86 : vector<64x32xf32>
    %88 = tpu.transpose %87, [1, 0] : vector<64x32xf32> -> vector<32x64xf32>
    %c0_24 = arith.constant 0 : index
    %c0_25 = arith.constant 0 : index
    %c0_26 = arith.constant 0 : index
    %89 = vector.load %arg8[%c0_24, %c0_25, %c0_26] : memref<1x32x64xf32, #tpu.memory_space<vmem>>, vector<1x32x64xf32>
    %90 = vector.shape_cast %89 : vector<1x32x64xf32> to vector<32x64xf32>
    %91 = vector.shape_cast %88 : vector<32x64xf32> to vector<1x32x64xf32>
    tpu.vector_store %arg8[%c0_24, %c0_25, %c0_26], %91 {strides = array<i32>} : memref<1x32x64xf32, #tpu.memory_space<vmem>>, vector<1x32x64xf32>,
    return
  }
  func.func @transform_0(%arg0: i32) -> (i32, i32, i32) {
    %c0_i32 = arith.constant 0 : i32
    %c0_i32_0 = arith.constant 0 : i32
    %c0_i32_1 = arith.constant 0 : i32
    return %arg0, %c0_i32, %c0_i32_0 : i32, i32, i32
  }
  func.func @transform_1(%arg0: i32) -> (i32, i32) {
    %c0_i32 = arith.constant 0 : i32
    %c0_i32_0 = arith.constant 0 : i32
    %c0_i32_1 = arith.constant 0 : i32
    return %c0_i32, %c0_i32_0 : i32, i32
  }
  func.func @transform_2(%arg0: i32) -> (i32, i32) {
    %c0_i32 = arith.constant 0 : i32
    %c0_i32_0 = arith.constant 0 : i32
    %c0_i32_1 = arith.constant 0 : i32
    return %c0_i32, %c0_i32_0 : i32, i32
  }
  func.func @transform_3(%arg0: i32) -> (i32, i32) {
    %c0_i32 = arith.constant 0 : i32
    %c0_i32_0 = arith.constant 0 : i32
    %c0_i32_1 = arith.constant 0 : i32
    return %c0_i32, %c0_i32_0 : i32, i32
  }
  func.func @transform_4(%arg0: i32) -> (i32, i32) {
    %c0_i32 = arith.constant 0 : i32
    %c0_i32_0 = arith.constant 0 : i32
    %c0_i32_1 = arith.constant 0 : i32
    return %c0_i32, %c0_i32_0 : i32, i32
  }
  func.func @transform_5(%arg0: i32) -> (i32, i32) {
    %c0_i32 = arith.constant 0 : i32
    %c0_i32_0 = arith.constant 0 : i32
    %c0_i32_1 = arith.constant 0 : i32
    return %c0_i32, %c0_i32_0 : i32, i32
  }
  func.func @transform_6(%arg0: i32) -> (i32, i32) {
    %c0_i32 = arith.constant 0 : i32
    %c0_i32_0 = arith.constant 0 : i32
    %c0_i32_1 = arith.constant 0 : i32
    return %c0_i32, %c0_i32_0 : i32, i32
  }
  func.func @transform_7(%arg0: i32) -> (i32, i32, i32) {
    %c0_i32 = arith.constant 0 : i32
    %c0_i32_0 = arith.constant 0 : i32
    %c0_i32_1 = arith.constant 0 : i32
    return %arg0, %c0_i32, %c0_i32_0 : i32, i32, i32
  }
}

</mosaic_0001>

<llo_original>
// kernel: self_attention.1
$region0: #{self_attention.1}
  #allocation0 [shape = 'u32[]', space=smem, size = 0x4, offset = 0x4, fixed_abs, tag = 'smem constant byte address 0x4 - core index']
  #allocation1 [shape = 'u32[72,128]{1,0:T(1,128)}', space=vmem, size = 0x9000, scoped, tag = 'internal scratch']
  %s0 = inlined_call_operand.vmem [shape: f32[2,32,64], index: 0, kind: input, shape index: {}]
  %s1 = inlined_call_operand.vmem [shape: f32[1,32], index: 1, kind: input, shape index: {}]
  %s2 = inlined_call_operand.vmem [shape: f32[1,32], index: 2, kind: input, shape index: {}]
  %s3 = inlined_call_operand.vmem [shape: bf16[32,96], index: 3, kind: input, shape index: {}]
  %s4 = inlined_call_operand.vmem [shape: f32[1,96], index: 4, kind: input, shape index: {}]
  %s5 = inlined_call_operand.vmem [shape: bf16[32,32], index: 5, kind: input, shape index: {}]
  %s6 = inlined_call_operand.vmem [shape: f32[1,32], index: 6, kind: input, shape index: {}]
  %s7 = inlined_call_operand.vmem [shape: f32[2,32,64], index: 7, kind: output, shape index: {}]
  %s8 = sld [smem:[#allocation0]]
  $region61: #{self_attention.1} parent=0
    _
  %s10 = ssub.s32 1, %s8
  %s11 = scalar_select 0, %s10, %s8
  loop: start=0, step=1, limit=4
  $region2: #{self_attention.1} parent=0 // loop_pre_header
    _
  $region3: #{self_attention.1} parent=0 // loop_header
    %s13 = sphi 0, %s17
    %p14 = scmp.ge.s32.totalorder %s13, 4
    %s23 = sphi 0, %s25
    %s26 = sphi 0, %s23
    %s27 = sphi 0, %s26
    %s43 = sphi 0, %s27
    %s47 = sphi 0, %s47
    %s49 = sphi 0, %s47
    %s50 = sphi 0, %s49
    %s64 = sphi 0, %s50
    %s68 = sphi 0, %s68
    %s70 = sphi 0, %s68
    %s71 = sphi 0, %s70
    %s85 = sphi 0, %s71
    %s89 = sphi 0, %s89
    %s91 = sphi 0, %s89
    %s92 = sphi 0, %s91
    %s106 = sphi 0, %s92
    %s110 = sphi 0, %s110
    %s112 = sphi 0, %s110
    %s113 = sphi 0, %s112
    %s127 = sphi 0, %s113
    %s131 = sphi 0, %s131
    %s133 = sphi 0, %s131
    %s134 = sphi 0, %s133
    %s148 = sphi 0, %s134
    %s152 = sphi 0, %s152
    %s154 = sphi 0, %s152
    %s155 = sphi 0, %s154
    %s169 = sphi 0, %s155
    %s175 = sphi 0, %s177
    %s178 = sphi 0, %s175
    %s179 = sphi 0, %s178
    %s195 = sphi 0, %s179
  $region4: #{self_attention.1} parent=0 // loop_header_branch
    %16 = sbr.rel (%p14) target = $region8
  $region5: #{self_attention.1} parent=0 // loop_body
    %s18 = ssub.s32 %s13, 1
    %s19 = ssub.s32 %s13, 2
    %s20 = sadd.s32 %s13, 1
    %s21 = ssub.s32 %s13, %s20
    %p22 = scmp.eq.s32.totalorder %s21, 0
    %s24 = sadd.s32 %s23, 1
    %s25 = scalar_select %p22, %s23, %s24
    %p28 = pneg %p22
    %p29 = scmp.eq.s32.totalorder %s13, 1
    %p30 = por %p28, %p29
    %p31 = scmp.ne.s32.totalorder %s23, %s26
    %p32 = scmp.eq.s32.totalorder %s13, 0
    %p33 = por %p31, %p32
    %p34 = scmp.ne.s32.totalorder %s23, %s26
    %p35 = scmp.eq.s32.totalorder %s18, 1
    %p36 = por %p34, %p35
    %p37 = scmp.ne.s32.totalorder %s26, %s27
    %p38 = scmp.eq.s32.totalorder %s18, 0
    %p39 = por %p37, %p38
    %p40 = scmp.ne.s32.totalorder %s26, %s27
    %p41 = scmp.eq.s32.totalorder %s19, 1
    %p42 = por %p40, %p41
    %p44 = scmp.ne.s32.totalorder %s27, %s43
    %p45 = scmp.eq.s32.totalorder %s19, 0
    %p46 = por %p44, %p45
    %s48 = sadd.s32 %s47, 1
    %p51 = scmp.eq.s32.totalorder %s13, 1
    %p52 = scmp.ne.s32.totalorder %s47, %s49
    %p53 = scmp.eq.s32.totalorder %s13, 0
    %p54 = por %p52, %p53
    %p55 = scmp.ne.s32.totalorder %s47, %s49
    %p56 = scmp.eq.s32.totalorder %s18, 1
    %p57 = por %p55, %p56
    %p58 = scmp.ne.s32.totalorder %s49, %s50
    %p59 = scmp.eq.s32.totalorder %s18, 0
    %p60 = por %p58, %p59
    %p61 = scmp.ne.s32.totalorder %s49, %s50
    %p62 = scmp.eq.s32.totalorder %s19, 1
    %p63 = por %p61, %p62
    %p65 = scmp.ne.s32.totalorder %s50, %s64
    %p66 = scmp.eq.s32.totalorder %s19, 0
    %p67 = por %p65, %p66
    %s69 = sadd.s32 %s68, 1
    %p72 = scmp.eq.s32.totalorder %s13, 1
    %p73 = scmp.ne.s32.totalorder %s68, %s70
    %p74 = scmp.eq.s32.totalorder %s13, 0
    %p75 = por %p73, %p74
    %p76 = scmp.ne.s32.totalorder %s68, %s70
    %p77 = scmp.eq.s32.totalorder %s18, 1
    %p78 = por %p76, %p77
    %p79 = scmp.ne.s32.totalorder %s70, %s71
    %p80 = scmp.eq.s32.totalorder %s18, 0
    %p81 = por %p79, %p80
    %p82 = scmp.ne.s32.totalorder %s70, %s71
    %p83 = scmp.eq.s32.totalorder %s19, 1
    %p84 = por %p82, %p83
    %p86 = scmp.ne.s32.totalorder %s71, %s85
    %p87 = scmp.eq.s32.totalorder %s19, 0
    %p88 = por %p86, %p87
    %s90 = sadd.s32 %s89, 1
    %p93 = scmp.eq.s32.totalorder %s13, 1
    %p94 = scmp.ne.s32.totalorder %s89, %s91
    %p95 = scmp.eq.s32.totalorder %s13, 0
    %p96 = por %p94, %p95
    %p97 = scmp.ne.s32.totalorder %s89, %s91
    %p98 = scmp.eq.s32.totalorder %s18, 1
    %p99 = por %p97, %p98
    %p100 = scmp.ne.s32.totalorder %s91, %s92
    %p101 = scmp.eq.s32.totalorder %s18, 0
    %p102 = por %p100, %p101
    %p103 = scmp.ne.s32.totalorder %s91, %s92
    %p104 = scmp.eq.s32.totalorder %s19, 1
    %p105 = por %p103, %p104
    %p107 = scmp.ne.s32.totalorder %s92, %s106
    %p108 = scmp.eq.s32.totalorder %s19, 0
    %p109 = por %p107, %p108
    %s111 = sadd.s32 %s110, 1
    %p114 = scmp.eq.s32.totalorder %s13, 1
    %p115 = scmp.ne.s32.totalorder %s110, %s112
    %p116 = scmp.eq.s32.totalorder %s13, 0
    %p117 = por %p115, %p116
    %p118 = scmp.ne.s32.totalorder %s110, %s112
    %p119 = scmp.eq.s32.totalorder %s18, 1
    %p120 = por %p118, %p119
    %p121 = scmp.ne.s32.totalorder %s112, %s113
    %p122 = scmp.eq.s32.totalorder %s18, 0
    %p123 = por %p121, %p122
    %p124 = scmp.ne.s32.totalorder %s112, %s113
    %p125 = scmp.eq.s32.totalorder %s19, 1
    %p126 = por %p124, %p125
    %p128 = scmp.ne.s32.totalorder %s113, %s127
    %p129 = scmp.eq.s32.totalorder %s19, 0
    %p130 = por %p128, %p129
    %s132 = sadd.s32 %s131, 1
    %p135 = scmp.eq.s32.totalorder %s13, 1
    %p136 = scmp.ne.s32.totalorder %s131, %s133
    %p137 = scmp.eq.s32.totalorder %s13, 0
    %p138 = por %p136, %p137
    %p139 = scmp.ne.s32.totalorder %s131, %s133
    %p140 = scmp.eq.s32.totalorder %s18, 1
    %p141 = por %p139, %p140
    %p142 = scmp.ne.s32.totalorder %s133, %s134
    %p143 = scmp.eq.s32.totalorder %s18, 0
    %p144 = por %p142, %p143
    %p145 = scmp.ne.s32.totalorder %s133, %s134
    %p146 = scmp.eq.s32.totalorder %s19, 1
    %p147 = por %p145, %p146
    %p149 = scmp.ne.s32.totalorder %s134, %s148
    %p150 = scmp.eq.s32.totalorder %s19, 0
    %p151 = por %p149, %p150
    %s153 = sadd.s32 %s152, 1
    %p156 = scmp.eq.s32.totalorder %s13, 1
    %p157 = scmp.ne.s32.totalorder %s152, %s154
    %p158 = scmp.eq.s32.totalorder %s13, 0
    %p159 = por %p157, %p158
    %p160 = scmp.ne.s32.totalorder %s152, %s154
    %p161 = scmp.eq.s32.totalorder %s18, 1
    %p162 = por %p160, %p161
    %p163 = scmp.ne.s32.totalorder %s154, %s155
    %p164 = scmp.eq.s32.totalorder %s18, 0
    %p165 = por %p163, %p164
    %p166 = scmp.ne.s32.totalorder %s154, %s155
    %p167 = scmp.eq.s32.totalorder %s19, 1
    %p168 = por %p166, %p167
    %p170 = scmp.ne.s32.totalorder %s155, %s169
    %p171 = scmp.eq.s32.totalorder %s19, 0
    %p172 = por %p170, %p171
    %s173 = ssub.s32 %s13, %s20
    %p174 = scmp.eq.s32.totalorder %s173, 0
    %s176 = sadd.s32 %s175, 1
    %s177 = scalar_select %p174, %s175, %s176
    %p180 = pneg %p174
    %p181 = scmp.eq.s32.totalorder %s13, 1
    %p182 = por %p180, %p181
    %p183 = scmp.ne.s32.totalorder %s175, %s178
    %p184 = scmp.eq.s32.totalorder %s13, 0
    %p185 = por %p183, %p184
    %p186 = scmp.ne.s32.totalorder %s175, %s178
    %p187 = scmp.eq.s32.totalorder %s18, 1
    %p188 = por %p186, %p187
    %p189 = scmp.ne.s32.totalorder %s178, %s179
    %p190 = scmp.eq.s32.totalorder %s18, 0
    %p191 = por %p189, %p190
    %p192 = scmp.ne.s32.totalorder %s178, %s179
    %p193 = scmp.eq.s32.totalorder %s19, 1
    %p194 = por %p192, %p193
    %p196 = scmp.ne.s32.totalorder %s179, %s195
    %p197 = scmp.eq.s32.totalorder %s19, 0
    %p198 = por %p196, %p197
    %p199 = scmp.le.s32.totalorder 1, %s13
    %p200 = scmp.lt.s32.totalorder %s13, 3
    %p201 = pnand %p199, %p200
    %p202 = pneg %p201
    // Predicated region
    $region9: #{self_attention.1} parent=5 // pred_check
      _
    $region10: #{self_attention.1} parent=5 // pred_check_branch
      %204 = sbr.rel (%p201) target = $region12
    $region11: #{self_attention.1} parent=5 // pred_region
      %s205 = ssub.s32 %s13, 1
      // Predicated region
      $region13: #{self_attention.1} parent=11 // pred_check
        %p206 = pneg %p60
      $region14: #{self_attention.1} parent=11 // pred_check_branch
        %208 = sbr.rel (%p206) target = $region16
      $region15: #{self_attention.1} parent=11 // pred_region
        _
      $region16: #{self_attention.1} parent=11 // pred_fallthru
        _
      // Predicated region
      $region17: #{self_attention.1} parent=11 // pred_check
        %p209 = pneg %p81
      $region18: #{self_attention.1} parent=11 // pred_check_branch
        %211 = sbr.rel (%p209) target = $region20
      $region19: #{self_attention.1} parent=11 // pred_region
        _
      $region20: #{self_attention.1} parent=11 // pred_fallthru
        _
      // Predicated region
      $region21: #{self_attention.1} parent=11 // pred_check
        %p212 = pneg %p102
      $region22: #{self_attention.1} parent=11 // pred_check_branch
        %214 = sbr.rel (%p212) target = $region24
      $region23: #{self_attention.1} parent=11 // pred_region
        _
      $region24: #{self_attention.1} parent=11 // pred_fallthru
        _
      // Predicated region
      $region25: #{self_attention.1} parent=11 // pred_check
        %p215 = pneg %p123
      $region26: #{self_attention.1} parent=11 // pred_check_branch
        %217 = sbr.rel (%p215) target = $region28
      $region27: #{self_attention.1} parent=11 // pred_region
        _
      $region28: #{self_attention.1} parent=11 // pred_fallthru
        _
      // Predicated region
      $region29: #{self_attention.1} parent=11 // pred_check
        %p218 = pneg %p144
      $region30: #{self_attention.1} parent=11 // pred_check_branch
        %220 = sbr.rel (%p218) target = $region32
      $region31: #{self_attention.1} parent=11 // pred_region
        _
      $region32: #{self_attention.1} parent=11 // pred_fallthru
        _
      // Predicated region
      $region33: #{self_attention.1} parent=11 // pred_check
        %p221 = pneg %p165
      $region34: #{self_attention.1} parent=11 // pred_check_branch
        %223 = sbr.rel (%p221) target = $region36
      $region35: #{self_attention.1} parent=11 // pred_region
        _
      $region36: #{self_attention.1} parent=11 // pred_fallthru
        _
    $region12: #{self_attention.1} parent=5 // pred_fallthru
      _
    %p224 = scmp.lt.s32.totalorder %s13, 2
    // Predicated region
    $region37: #{self_attention.1} parent=5 // pred_check
      %p225 = pneg %p224
    $region38: #{self_attention.1} parent=5 // pred_check_branch
      %227 = sbr.rel (%p225) target = $region40
    $region39: #{self_attention.1} parent=5 // pred_region
      // Predicated region
      $region41: #{self_attention.1} parent=39 // pred_check
        %p228 = pneg %p33
      $region42: #{self_attention.1} parent=39 // pred_check_branch
        %230 = sbr.rel (%p228) target = $region44
      $region43: #{self_attention.1} parent=39 // pred_region
        %p231 = scmp.lt.s32.totalorder %s13, 1
        %s232 = scalar_select %p231, %s13, 1
        %s233 = smul.addr %s232, 4
        %s234 = smul.addr %s233, 8
        %s235 = scalar_lea.vmem %s0, %s234
      $region44: #{self_attention.1} parent=39 // pred_fallthru
        _
    $region40: #{self_attention.1} parent=5 // pred_fallthru
      _
    %p236 = scmp.le.s32.totalorder 1, %s13
    %p237 = scmp.lt.s32.totalorder %s13, 3
    %p238 = pnand %p236, %p237
    %p239 = pneg %p238
    // Predicated region
    $region45: #{self_attention.1} parent=5 // pred_check
      _
    $region46: #{self_attention.1} parent=5 // pred_check_branch
      %241 = sbr.rel (%p238) target = $region48
    $region47: #{self_attention.1} parent=5 // pred_region
      %s242 = ssub.s32 %s13, 1
      %p243 = scmp.lt.s32.totalorder %s18, 1
      %s244 = scalar_select %p243, %s18, 1
      %s245 = smul.addr %s244, 4
      %s246 = smul.addr %s245, 8
      %s247 = scalar_lea.vmem %s0, %s246
      %p248 = pneg %p39
      %p249 = pneg %p36
      %p250 = pneg %p60
      %p251 = pneg %p57
      %p252 = pneg %p81
      %p253 = pneg %p78
      %p254 = pneg %p102
      %p255 = pneg %p99
      %p256 = pneg %p123
      %p257 = pneg %p120
      %p258 = pneg %p144
      %p259 = pneg %p141
      %p260 = pneg %p165
      %p261 = pneg %p162
      %p262 = pneg %p191
      %p263 = pneg %p188
      %p264 = scmp.lt.s32.totalorder %s18, 1
      %s265 = scalar_select %p264, %s18, 1
      %s266 = smul.addr %s265, 4
      %s267 = smul.addr %s266, 8
      %s268 = scalar_lea.vmem %s7, %s267
      %p269 = scmp.lt.s32.totalorder %s18, 1
      %s270 = scalar_select %p269, %s18, 1
      %s271 = smul.addr %s270, 4
      %s272 = smul.addr %s271, 8
      %s273 = scalar_lea.vmem %s0, %s272
      %p274 = scmp.lt.s32.totalorder %s18, 1
      %s275 = scalar_select %p274, %s18, 1
      %s276 = smul.addr %s275, 4
      %s277 = smul.addr %s276, 8
      %s278 = scalar_lea.vmem %s7, %s277
      %v280 = vld [vmem:[%s273] sm:$0xff]
      %v281 = vld [vmem:[%s273 + $0x8] sm:$0xff]
      %v282 = vld [vmem:[%s273 + $0x10] sm:$0xff]
      %v283 = vld [vmem:[%s273 + $0x18] sm:$0xff]
      %284 = vxpose.xlu0.b32.start [1/16] %v280, 128
      %285 = vxpose.xlu0.b32.cont [2/16] %v281, 128
      %286 = vxpose.xlu0.b32.cont [3/16] %v282, 128
      %287 = vxpose.xlu0.b32.cont [4/16] %v283, 128
      %288 = vxpose.xlu0.b32.cont [5/16] 0.0, 128
      %289 = vxpose.xlu0.b32.cont [6/16] 0.0, 128
      %290 = vxpose.xlu0.b32.cont [7/16] 0.0, 128
      %291 = vxpose.xlu0.b32.cont [8/16] 0.0, 128
      %292 = vxpose.xlu0.b32.cont [9/16] 0.0, 128
      %293 = vxpose.xlu0.b32.cont [10/16] 0.0, 128
      %294 = vxpose.xlu0.b32.cont [11/16] 0.0, 128
      %295 = vxpose.xlu0.b32.cont [12/16] 0.0, 128
      %296 = vxpose.xlu0.b32.cont [13/16] 0.0, 128
      %297 = vxpose.xlu0.b32.cont [14/16] 0.0, 128
      %298 = vxpose.xlu0.b32.cont [15/16] 0.0, 128
      %299 = vxpose.xlu0.b32.end [16/16] 0.0, 128
      %v300 = vpop.trf.xlu0
      %v301 = vpop.trf.xlu0
      %v302 = vpop.trf.xlu0
      %v303 = vpop.trf.xlu0
      %v304 = vpop.trf.xlu0
      %v305 = vpop.trf.xlu0
      %v306 = vpop.trf.xlu0
      %v307 = vpop.trf.xlu0
      %v308 = vpop.trf.xlu0
      %v309 = vpop.trf.xlu0
      %v310 = vpop.trf.xlu0
      %v311 = vpop.trf.xlu0
      %v312 = vpop.trf.xlu0
      %v313 = vpop.trf.xlu0
      %v314 = vpop.trf.xlu0
      %v315 = vpop.trf.xlu0
      %vm316 = vcmask 261120
      %v317 = vsel %vm316, %v300, 0.0
      %318 = vadd.xlane.f32.xlu0 %v317
      %v319 = vpop.xlane.xlu0 %318
      %v320 = vsel %vm316, %v301, 0.0
      %321 = vadd.xlane.f32.xlu0 %v320
      %v322 = vpop.xlane.xlu0 %321
      %v323 = vsel %vm316, %v302, 0.0
      %324 = vadd.xlane.f32.xlu0 %v323
      %v325 = vpop.xlane.xlu0 %324
      %v326 = vsel %vm316, %v303, 0.0
      %327 = vadd.xlane.f32.xlu0 %v326
      %v328 = vpop.xlane.xlu0 %327
      %v329 = vsel %vm316, %v304, 0.0
      %330 = vadd.xlane.f32.xlu0 %v329
      %v331 = vpop.xlane.xlu0 %330
      %v332 = vsel %vm316, %v305, 0.0
      %333 = vadd.xlane.f32.xlu0 %v332
      %v334 = vpop.xlane.xlu0 %333
      %v335 = vsel %vm316, %v306, 0.0
      %336 = vadd.xlane.f32.xlu0 %v335
      %v337 = vpop.xlane.xlu0 %336
      %v338 = vsel %vm316, %v307, 0.0
      %339 = vadd.xlane.f32.xlu0 %v338
      %v340 = vpop.xlane.xlu0 %339
      %v341 = vrcp.pop 32.0
      %v342 = vmul.f32 32.0, %v341
      %v343 = vsub.f32 1.0, %v342
      %v344 = vmul.f32 %v341, %v343
      %v345 = vadd.f32 %v341, %v344
      %vm346 = vweird.f32 %v341
      %v347 = vsel %vm346, %v341, %v345
      %v348 = vmul.f32 %v319, %v347
      %v349 = vmul.f32 %v322, %v347
      %v350 = vmul.f32 %v325, %v347
      %v351 = vmul.f32 %v328, %v347
      %v352 = vmul.f32 %v331, %v347
      %v353 = vmul.f32 %v334, %v347
      %v354 = vmul.f32 %v337, %v347
      %v355 = vmul.f32 %v340, %v347
      %v356 = vsub.f32 %v300, %v348
      %v357 = vsub.f32 %v301, %v349
      %v358 = vsub.f32 %v302, %v350
      %v359 = vsub.f32 %v303, %v351
      %v360 = vsub.f32 %v304, %v352
      %v361 = vsub.f32 %v305, %v353
      %v362 = vsub.f32 %v306, %v354
      %v363 = vsub.f32 %v307, %v355
      %v364 = vmul.f32 %v356, %v356
      %v365 = vmul.f32 %v357, %v357
      %v366 = vmul.f32 %v358, %v358
      %v367 = vmul.f32 %v359, %v359
      %v368 = vmul.f32 %v360, %v360
      %v369 = vmul.f32 %v361, %v361
      %v370 = vmul.f32 %v362, %v362
      %v371 = vmul.f32 %v363, %v363
      %v372 = vsel %vm316, %v364, 0.0
      %373 = vadd.xlane.f32.xlu0 %v372
      %v374 = vpop.xlane.xlu0 %373
      %v375 = vsel %vm316, %v365, 0.0
      %376 = vadd.xlane.f32.xlu0 %v375
      %v377 = vpop.xlane.xlu0 %376
      %v378 = vsel %vm316, %v366, 0.0
      %379 = vadd.xlane.f32.xlu0 %v378
      %v380 = vpop.xlane.xlu0 %379
      %v381 = vsel %vm316, %v367, 0.0
      %382 = vadd.xlane.f32.xlu0 %v381
      %v383 = vpop.xlane.xlu0 %382
      %v384 = vsel %vm316, %v368, 0.0
      %385 = vadd.xlane.f32.xlu0 %v384
      %v386 = vpop.xlane.xlu0 %385
      %v387 = vsel %vm316, %v369, 0.0
      %388 = vadd.xlane.f32.xlu0 %v387
      %v389 = vpop.xlane.xlu0 %388
      %v390 = vsel %vm316, %v370, 0.0
      %391 = vadd.xlane.f32.xlu0 %v390
      %v392 = vpop.xlane.xlu0 %391
      %v393 = vsel %vm316, %v371, 0.0
      %394 = vadd.xlane.f32.xlu0 %v393
      %v395 = vpop.xlane.xlu0 %394
      %v396 = vmul.f32 %v374, %v347
      %v397 = vmul.f32 %v377, %v347
      %v398 = vmul.f32 %v380, %v347
      %v399 = vmul.f32 %v383, %v347
      %v400 = vmul.f32 %v386, %v347
      %v401 = vmul.f32 %v389, %v347
      %v402 = vmul.f32 %v392, %v347
      %v403 = vmul.f32 %v395, %v347
      %v404 = vadd.f32 %v396, 1e-05
      %v405 = vadd.f32 %v397, 1e-05
      %v406 = vadd.f32 %v398, 1e-05
      %v407 = vadd.f32 %v399, 1e-05
      %v408 = vadd.f32 %v400, 1e-05
      %v409 = vadd.f32 %v401, 1e-05
      %v410 = vadd.f32 %v402, 1e-05
      %v411 = vadd.f32 %v403, 1e-05
      %v412 = vrsqrt.pop %v404
      %v413 = vmul.f32 %v412, %v404
      %v414 = vmul.f32 %v413, %v412
      %v415 = vmul.f32 0.5, %v414
      %v416 = vsub.f32 1.5, %v415
      %v417 = vmul.f32 %v412, %v416
      %vm418 = vweird.f32 %v404
      %vm419 = vweird.f32 %v412
      %vm420 = vmor %vm418, %vm419
      %v421 = vsel %vm420, %v412, %v417
      %v422 = vrsqrt.pop %v405
      %v423 = vmul.f32 %v422, %v405
      %v424 = vmul.f32 %v423, %v422
      %v425 = vmul.f32 0.5, %v424
      %v426 = vsub.f32 1.5, %v425
      %v427 = vmul.f32 %v422, %v426
      %vm428 = vweird.f32 %v405
      %vm429 = vweird.f32 %v422
      %vm430 = vmor %vm428, %vm429
      %v431 = vsel %vm430, %v422, %v427
      %v432 = vrsqrt.pop %v406
      %v433 = vmul.f32 %v432, %v406
      %v434 = vmul.f32 %v433, %v432
      %v435 = vmul.f32 0.5, %v434
      %v436 = vsub.f32 1.5, %v435
      %v437 = vmul.f32 %v432, %v436
      %vm438 = vweird.f32 %v406
      %vm439 = vweird.f32 %v432
      %vm440 = vmor %vm438, %vm439
      %v441 = vsel %vm440, %v432, %v437
      %v442 = vrsqrt.pop %v407
      %v443 = vmul.f32 %v442, %v407
      %v444 = vmul.f32 %v443, %v442
      %v445 = vmul.f32 0.5, %v444
      %v446 = vsub.f32 1.5, %v445
      %v447 = vmul.f32 %v442, %v446
      %vm448 = vweird.f32 %v407
      %vm449 = vweird.f32 %v442
      %vm450 = vmor %vm448, %vm449
      %v451 = vsel %vm450, %v442, %v447
      %v452 = vrsqrt.pop %v408
      %v453 = vmul.f32 %v452, %v408
      %v454 = vmul.f32 %v453, %v452
      %v455 = vmul.f32 0.5, %v454
      %v456 = vsub.f32 1.5, %v455
      %v457 = vmul.f32 %v452, %v456
      %vm458 = vweird.f32 %v408
      %vm459 = vweird.f32 %v452
      %vm460 = vmor %vm458, %vm459
      %v461 = vsel %vm460, %v452, %v457
      %v462 = vrsqrt.pop %v409
      %v463 = vmul.f32 %v462, %v409
      %v464 = vmul.f32 %v463, %v462
      %v465 = vmul.f32 0.5, %v464
      %v466 = vsub.f32 1.5, %v465
      %v467 = vmul.f32 %v462, %v466
      %vm468 = vweird.f32 %v409
      %vm469 = vweird.f32 %v462
      %vm470 = vmor %vm468, %vm469
      %v471 = vsel %vm470, %v462, %v467
      %v472 = vrsqrt.pop %v410
      %v473 = vmul.f32 %v472, %v410
      %v474 = vmul.f32 %v473, %v472
      %v475 = vmul.f32 0.5, %v474
      %v476 = vsub.f32 1.5, %v475
      %v477 = vmul.f32 %v472, %v476
      %vm478 = vweird.f32 %v410
      %vm479 = vweird.f32 %v472
      %vm480 = vmor %vm478, %vm479
      %v481 = vsel %vm480, %v472, %v477
      %v482 = vrsqrt.pop %v411
      %v483 = vmul.f32 %v482, %v411
      %v484 = vmul.f32 %v483, %v482
      %v485 = vmul.f32 0.5, %v484
      %v486 = vsub.f32 1.5, %v485
      %v487 = vmul.f32 %v482, %v486
      %vm488 = vweird.f32 %v411
      %vm489 = vweird.f32 %v482
      %vm490 = vmor %vm488, %vm489
      %v491 = vsel %vm490, %v482, %v487
      %v492 = vmul.f32 %v356, %v421
      %v493 = vmul.f32 %v357, %v431
      %v494 = vmul.f32 %v358, %v441
      %v495 = vmul.f32 %v359, %v451
      %v496 = vmul.f32 %v360, %v461
      %v497 = vmul.f32 %v361, %v471
      %v498 = vmul.f32 %v362, %v481
      %v499 = vmul.f32 %v363, %v491
      %v500 = vld [vmem:[%s1] sm:$0x1]
      %v502 = vperm.slane %v500, 0
      %v504 = vmul.f32 %v492, %v502
      %v505 = vmul.f32 %v493, %v502
      %v506 = vmul.f32 %v494, %v502
      %v507 = vmul.f32 %v495, %v502
      %v508 = vmul.f32 %v496, %v502
      %v509 = vmul.f32 %v497, %v502
      %v510 = vmul.f32 %v498, %v502
      %v511 = vmul.f32 %v499, %v502
      %v512 = vld [vmem:[%s2] sm:$0x1]
      %v514 = vperm.slane %v512, 0
      %v516 = vadd.f32 %v504, %v514
      %v517 = vadd.f32 %v505, %v514
      %v518 = vadd.f32 %v506, %v514
      %v519 = vadd.f32 %v507, %v514
      %v520 = vadd.f32 %v508, %v514
      %v521 = vadd.f32 %v509, %v514
      %v522 = vadd.f32 %v510, %v514
      %v523 = vadd.f32 %v511, %v514
      %v524 = vpack.c.bf16 %v517, %v516
      %v525 = vpack.c.bf16 %v519, %v518
      %v526 = vpack.c.bf16 %v521, %v520
      %v527 = vpack.c.bf16 %v523, %v522
      %v528 = vld [vmem:[%s3] sm:$0xf]
      %v529 = vld [vmem:[%s3 + $0x4] sm:$0xf]
      %v530 = vld [vmem:[%s3 + $0x8] sm:$0xf]
      %v531 = vld [vmem:[%s3 + $0xc] sm:$0xf]
      %v532 = vld [vmem:[%s4] sm:$0x1]
      %v534 = vperm.slane %v532, 0
      %v540 = vunpack.c.l.b16 %v528
      %v541 = vunpack.c.l.b16 %v529
      %v542 = vunpack.c.l.b16 %v530
      %v543 = vunpack.c.l.b16 %v531
      %v544 = vpack.c.b16 %v541, %v540
      %v545 = vpack.c.b16 %v543, %v542
      %v549 = vsel %vm316, %v524, 0
      %v552 = vsel %vm316, %v525, 0
      %v555 = vsel %vm316, %v526, 0
      %v558 = vsel %vm316, %v527, 0
      %560 = vmatpush.bf16.msra.mxu0 0
      %561 = vmatpush.bf16.msra.mxu0 0
      %562 = vmatpush.bf16.msra.mxu0 0
      %563 = vmatpush.bf16.msra.mxu0 0
      %564 = vmatpush.bf16.msra.mxu0 0
      %565 = vmatpush.bf16.msra.mxu0 0
      %566 = vmatpush.bf16.msra.mxu0 %v545
      %567 = vmatpush.bf16.msra.mxu0 %v544
      %568 = vmatmul.bf16.gmra.mxu0 %v549
      %v569 = vpop.f32.mrf.mxu0
      %v570 = vadd.f32 %v534, %v569
      %v571 = vpop.f32.mrf.mxu0
      %v572 = vadd.f32 %v534, %v571
      %573 = vmatmul.bf16.gmra.mxu0 %v552
      %v574 = vpop.f32.mrf.mxu0
      %v575 = vadd.f32 %v534, %v574
      %v576 = vpop.f32.mrf.mxu0
      %v577 = vadd.f32 %v534, %v576
      %578 = vmatmul.bf16.gmra.mxu0 %v555
      %v579 = vpop.f32.mrf.mxu0
      %v580 = vadd.f32 %v534, %v579
      %v581 = vpop.f32.mrf.mxu0
      %v582 = vadd.f32 %v534, %v581
      %583 = vmatmul.bf16.gmra.mxu0 %v558
      %v584 = vpop.f32.mrf.mxu0
      %v585 = vadd.f32 %v534, %v584
      %v586 = vpop.f32.mrf.mxu0
      %v587 = vadd.f32 %v534, %v586
      %588 = vdwg.mxu0
      %v589 = vpack.c.bf16 %v570, %v570
      %v590 = vpack.c.bf16 %v572, %v572
      %v591 = vpack.c.bf16 %v575, %v575
      %v592 = vpack.c.bf16 %v577, %v577
      %v593 = vpack.c.bf16 %v580, %v580
      %v594 = vpack.c.bf16 %v582, %v582
      %v595 = vpack.c.bf16 %v585, %v585
      %v596 = vpack.c.bf16 %v587, %v587
      %605 = vrot.lane.b32.xlu0 %v589, 120
      %v606 = vpop.permute.xlu0 %605
      %607 = vrot.lane.b32.xlu0 %v590, 120
      %v608 = vpop.permute.xlu0 %607
      %609 = vrot.lane.b32.xlu0 %v591, 120
      %v610 = vpop.permute.xlu0 %609
      %611 = vrot.lane.b32.xlu0 %v592, 120
      %v612 = vpop.permute.xlu0 %611
      %613 = vrot.lane.b32.xlu0 %v593, 120
      %v614 = vpop.permute.xlu0 %613
      %615 = vrot.lane.b32.xlu0 %v594, 120
      %v616 = vpop.permute.xlu0 %615
      %617 = vrot.lane.b32.xlu0 %v595, 120
      %v618 = vpop.permute.xlu0 %617
      %619 = vrot.lane.b32.xlu0 %v596, 120
      %v620 = vpop.permute.xlu0 %619
      %621 = vrot.lane.b32.xlu0 %v589, 112
      %v622 = vpop.permute.xlu0 %621
      %623 = vrot.lane.b32.xlu0 %v590, 112
      %v624 = vpop.permute.xlu0 %623
      %625 = vrot.lane.b32.xlu0 %v591, 112
      %v626 = vpop.permute.xlu0 %625
      %627 = vrot.lane.b32.xlu0 %v592, 112
      %v628 = vpop.permute.xlu0 %627
      %629 = vrot.lane.b32.xlu0 %v593, 112
      %v630 = vpop.permute.xlu0 %629
      %631 = vrot.lane.b32.xlu0 %v594, 112
      %v632 = vpop.permute.xlu0 %631
      %633 = vrot.lane.b32.xlu0 %v595, 112
      %v634 = vpop.permute.xlu0 %633
      %635 = vrot.lane.b32.xlu0 %v596, 112
      %v636 = vpop.permute.xlu0 %635
      %637 = vrot.lane.b32.xlu0 %v589, 104
      %v638 = vpop.permute.xlu0 %637
      %639 = vrot.lane.b32.xlu0 %v590, 104
      %v640 = vpop.permute.xlu0 %639
      %641 = vrot.lane.b32.xlu0 %v591, 104
      %v642 = vpop.permute.xlu0 %641
      %643 = vrot.lane.b32.xlu0 %v592, 104
      %v644 = vpop.permute.xlu0 %643
      %645 = vrot.lane.b32.xlu0 %v593, 104
      %v646 = vpop.permute.xlu0 %645
      %647 = vrot.lane.b32.xlu0 %v594, 104
      %v648 = vpop.permute.xlu0 %647
      %649 = vrot.lane.b32.xlu0 %v595, 104
      %v650 = vpop.permute.xlu0 %649
      %651 = vrot.lane.b32.xlu0 %v596, 104
      %v652 = vpop.permute.xlu0 %651
      %v653 = vunpack.c.l.b16 %v589
      %v654 = vunpack.c.l.b16 %v590
      %v655 = vunpack.c.l.b16 %v591
      %v656 = vunpack.c.l.b16 %v592
      %v657 = vunpack.c.l.b16 %v593
      %v658 = vunpack.c.l.b16 %v594
      %v659 = vunpack.c.l.b16 %v595
      %v660 = vunpack.c.l.b16 %v596
      %v661 = vpack.c.b16 %v654, %v653
      %v662 = vpack.c.b16 %v656, %v655
      %v663 = vpack.c.b16 %v658, %v657
      %v664 = vpack.c.b16 %v660, %v659
      %665 = vrot.lane.b32.xlu0 %v661, 96
      %v666 = vpop.permute.xlu0 %665
      %667 = vrot.lane.b32.xlu0 %v662, 96
      %v668 = vpop.permute.xlu0 %667
      %669 = vrot.lane.b32.xlu0 %v663, 96
      %v670 = vpop.permute.xlu0 %669
      %671 = vrot.lane.b32.xlu0 %v664, 96
      %v672 = vpop.permute.xlu0 %671
      %vm673 = vcmask 64512
      %v675 = vsel %vm673, %v661, 0
      %v678 = vsel %vm673, %v662, 0
      %v681 = vsel %vm673, %v663, 0
      %v684 = vsel %vm673, %v664, 0
      %v687 = vsel %vm673, %v666, 0
      %v690 = vsel %vm673, %v668, 0
      %v693 = vsel %vm673, %v670, 0
      %v696 = vsel %vm673, %v672, 0
      %698 = vmatpush.bf16.xpose.msra.mxu0 0
      %699 = vmatpush.bf16.xpose.msra.mxu0 0
      %700 = vmatpush.bf16.xpose.msra.mxu0 0
      %701 = vmatpush.bf16.xpose.msra.mxu0 0
      %702 = vmatpush.bf16.xpose.msra.mxu0 %v696
      %703 = vmatpush.bf16.xpose.msra.mxu0 %v693
      %704 = vmatpush.bf16.xpose.msra.mxu0 %v690
      %705 = vmatpush.bf16.xpose.msra.mxu0 %v687
      %706 = vmatmul.bf16.gmra.mxu0 %v675
      %v707 = vpop.f32.mrf.mxu0
      %v708 = vadd.f32 0.0, %v707
      %v709 = vpop.f32.mrf.mxu0
      %v710 = vadd.f32 0.0, %v709
      %711 = vmatmul.bf16.gmra.mxu0 %v678
      %v712 = vpop.f32.mrf.mxu0
      %v713 = vadd.f32 0.0, %v712
      %v714 = vpop.f32.mrf.mxu0
      %v715 = vadd.f32 0.0, %v714
      %716 = vmatmul.bf16.gmra.mxu0 %v681
      %v717 = vpop.f32.mrf.mxu0
      %v718 = vadd.f32 0.0, %v717
      %v719 = vpop.f32.mrf.mxu0
      %v720 = vadd.f32 0.0, %v719
      %721 = vmatmul.bf16.gmra.mxu0 %v684
      %v722 = vpop.f32.mrf.mxu0
      %v723 = vadd.f32 0.0, %v722
      %v724 = vpop.f32.mrf.mxu0
      %v725 = vadd.f32 0.0, %v724
      %726 = vdwg.mxu0
      %v727 = vunpack.c.l.b16 %v606
      %v728 = vunpack.c.l.b16 %v608
      %v729 = vunpack.c.l.b16 %v610
      %v730 = vunpack.c.l.b16 %v612
      %v731 = vunpack.c.l.b16 %v614
      %v732 = vunpack.c.l.b16 %v616
      %v733 = vunpack.c.l.b16 %v618
      %v734 = vunpack.c.l.b16 %v620
      %v735 = vpack.c.b16 %v728, %v727
      %v736 = vpack.c.b16 %v730, %v729
      %v737 = vpack.c.b16 %v732, %v731
      %v738 = vpack.c.b16 %v734, %v733
      %739 = vrot.lane.b32.xlu0 %v735, 96
      %v740 = vpop.permute.xlu0 %739
      %741 = vrot.lane.b32.xlu0 %v736, 96
      %v742 = vpop.permute.xlu0 %741
      %743 = vrot.lane.b32.xlu0 %v737, 96
      %v744 = vpop.permute.xlu0 %743
      %745 = vrot.lane.b32.xlu0 %v738, 96
      %v746 = vpop.permute.xlu0 %745
      %v748 = vsel %vm673, %v735, 0
      %v751 = vsel %vm673, %v736, 0
      %v754 = vsel %vm673, %v737, 0
      %v757 = vsel %vm673, %v738, 0
      %v760 = vsel %vm673, %v740, 0
      %v763 = vsel %vm673, %v742, 0
      %v766 = vsel %vm673, %v744, 0
      %v769 = vsel %vm673, %v746, 0
      %771 = vmatpush.bf16.xpose.msra.mxu0 0
      %772 = vmatpush.bf16.xpose.msra.mxu0 0
      %773 = vmatpush.bf16.xpose.msra.mxu0 0
      %774 = vmatpush.bf16.xpose.msra.mxu0 0
      %775 = vmatpush.bf16.xpose.msra.mxu0 %v769
      %776 = vmatpush.bf16.xpose.msra.mxu0 %v766
      %777 = vmatpush.bf16.xpose.msra.mxu0 %v763
      %778 = vmatpush.bf16.xpose.msra.mxu0 %v760
      %779 = vmatmul.bf16.gmra.mxu0 %v748
      %v780 = vpop.f32.mrf.mxu0
      %v781 = vadd.f32 0.0, %v780
      %v782 = vpop.f32.mrf.mxu0
      %v783 = vadd.f32 0.0, %v782
      %784 = vmatmul.bf16.gmra.mxu0 %v751
      %v785 = vpop.f32.mrf.mxu0
      %v786 = vadd.f32 0.0, %v785
      %v787 = vpop.f32.mrf.mxu0
      %v788 = vadd.f32 0.0, %v787
      %789 = vmatmul.bf16.gmra.mxu0 %v754
      %v790 = vpop.f32.mrf.mxu0
      %v791 = vadd.f32 0.0, %v790
      %v792 = vpop.f32.mrf.mxu0
      %v793 = vadd.f32 0.0, %v792
      %794 = vmatmul.bf16.gmra.mxu0 %v757
      %v795 = vpop.f32.mrf.mxu0
      %v796 = vadd.f32 0.0, %v795
      %v797 = vpop.f32.mrf.mxu0
      %v798 = vadd.f32 0.0, %v797
      %799 = vdwg.mxu0
      %v800 = vunpack.c.l.b16 %v622
      %v801 = vunpack.c.l.b16 %v624
      %v802 = vunpack.c.l.b16 %v626
      %v803 = vunpack.c.l.b16 %v628
      %v804 = vunpack.c.l.b16 %v630
      %v805 = vunpack.c.l.b16 %v632
      %v806 = vunpack.c.l.b16 %v634
      %v807 = vunpack.c.l.b16 %v636
      %v808 = vpack.c.b16 %v801, %v800
      %v809 = vpack.c.b16 %v803, %v802
      %v810 = vpack.c.b16 %v805, %v804
      %v811 = vpack.c.b16 %v807, %v806
      %812 = vrot.lane.b32.xlu0 %v808, 96
      %v813 = vpop.permute.xlu0 %812
      %814 = vrot.lane.b32.xlu0 %v809, 96
      %v815 = vpop.permute.xlu0 %814
      %816 = vrot.lane.b32.xlu0 %v810, 96
      %v817 = vpop.permute.xlu0 %816
      %818 = vrot.lane.b32.xlu0 %v811, 96
      %v819 = vpop.permute.xlu0 %818
      %v821 = vsel %vm673, %v808, 0
      %v824 = vsel %vm673, %v809, 0
      %v827 = vsel %vm673, %v810, 0
      %v830 = vsel %vm673, %v811, 0
      %v833 = vsel %vm673, %v813, 0
      %v836 = vsel %vm673, %v815, 0
      %v839 = vsel %vm673, %v817, 0
      %v842 = vsel %vm673, %v819, 0
      %844 = vmatpush.bf16.xpose.msra.mxu0 0
      %845 = vmatpush.bf16.xpose.msra.mxu0 0
      %846 = vmatpush.bf16.xpose.msra.mxu0 0
      %847 = vmatpush.bf16.xpose.msra.mxu0 0
      %848 = vmatpush.bf16.xpose.msra.mxu0 %v842
      %849 = vmatpush.bf16.xpose.msra.mxu0 %v839
      %850 = vmatpush.bf16.xpose.msra.mxu0 %v836
      %851 = vmatpush.bf16.xpose.msra.mxu0 %v833
      %852 = vmatmul.bf16.gmra.mxu0 %v821
      %v853 = vpop.f32.mrf.mxu0
      %v854 = vadd.f32 0.0, %v853
      %v855 = vpop.f32.mrf.mxu0
      %v856 = vadd.f32 0.0, %v855
      %857 = vmatmul.bf16.gmra.mxu0 %v824
      %v858 = vpop.f32.mrf.mxu0
      %v859 = vadd.f32 0.0, %v858
      %v860 = vpop.f32.mrf.mxu0
      %v861 = vadd.f32 0.0, %v860
      %862 = vmatmul.bf16.gmra.mxu0 %v827
      %v863 = vpop.f32.mrf.mxu0
      %v864 = vadd.f32 0.0, %v863
      %v865 = vpop.f32.mrf.mxu0
      %v866 = vadd.f32 0.0, %v865
      %867 = vmatmul.bf16.gmra.mxu0 %v830
      %v868 = vpop.f32.mrf.mxu0
      %v869 = vadd.f32 0.0, %v868
      %v870 = vpop.f32.mrf.mxu0
      %v871 = vadd.f32 0.0, %v870
      %872 = vdwg.mxu0
      %v873 = vunpack.c.l.b16 %v638
      %v874 = vunpack.c.l.b16 %v640
      %v875 = vunpack.c.l.b16 %v642
      %v876 = vunpack.c.l.b16 %v644
      %v877 = vunpack.c.l.b16 %v646
      %v878 = vunpack.c.l.b16 %v648
      %v879 = vunpack.c.l.b16 %v650
      %v880 = vunpack.c.l.b16 %v652
      %v881 = vpack.c.b16 %v874, %v873
      %v882 = vpack.c.b16 %v876, %v875
      %v883 = vpack.c.b16 %v878, %v877
      %v884 = vpack.c.b16 %v880, %v879
      %885 = vrot.lane.b32.xlu0 %v881, 96
      %v886 = vpop.permute.xlu0 %885
      %887 = vrot.lane.b32.xlu0 %v882, 96
      %v888 = vpop.permute.xlu0 %887
      %889 = vrot.lane.b32.xlu0 %v883, 96
      %v890 = vpop.permute.xlu0 %889
      %891 = vrot.lane.b32.xlu0 %v884, 96
      %v892 = vpop.permute.xlu0 %891
      %v894 = vsel %vm673, %v881, 0
      %v897 = vsel %vm673, %v882, 0
      %v900 = vsel %vm673, %v883, 0
      %v903 = vsel %vm673, %v884, 0
      %v906 = vsel %vm673, %v886, 0
      %v909 = vsel %vm673, %v888, 0
      %v912 = vsel %vm673, %v890, 0
      %v915 = vsel %vm673, %v892, 0
      %917 = vmatpush.bf16.xpose.msra.mxu0 0
      %918 = vmatpush.bf16.xpose.msra.mxu0 0
      %919 = vmatpush.bf16.xpose.msra.mxu0 0
      %920 = vmatpush.bf16.xpose.msra.mxu0 0
      %921 = vmatpush.bf16.xpose.msra.mxu0 %v915
      %922 = vmatpush.bf16.xpose.msra.mxu0 %v912
      %923 = vmatpush.bf16.xpose.msra.mxu0 %v909
      %924 = vmatpush.bf16.xpose.msra.mxu0 %v906
      %925 = vmatmul.bf16.gmra.mxu0 %v894
      %v926 = vpop.f32.mrf.mxu0
      %v927 = vadd.f32 0.0, %v926
      %v928 = vpop.f32.mrf.mxu0
      %v929 = vadd.f32 0.0, %v928
      %930 = vmatmul.bf16.gmra.mxu0 %v897
      %v931 = vpop.f32.mrf.mxu0
      %v932 = vadd.f32 0.0, %v931
      %v933 = vpop.f32.mrf.mxu0
      %v934 = vadd.f32 0.0, %v933
      %935 = vmatmul.bf16.gmra.mxu0 %v900
      %v936 = vpop.f32.mrf.mxu0
      %v937 = vadd.f32 0.0, %v936
      %v938 = vpop.f32.mrf.mxu0
      %v939 = vadd.f32 0.0, %v938
      %940 = vmatmul.bf16.gmra.mxu0 %v903
      %v941 = vpop.f32.mrf.mxu0
      %v942 = vadd.f32 0.0, %v941
      %v943 = vpop.f32.mrf.mxu0
      %v944 = vadd.f32 0.0, %v943
      %945 = vdwg.mxu0
      %vm946 = vcmask 523264
      %v947 = vsel %vm946, %v708, -inf
      %948 = vmax.xlane.f32.xlu0 %v947
      %v949 = vpop.xlane.xlu0 %948
      %v950 = vsel %vm946, %v710, -inf
      %951 = vmax.xlane.f32.xlu0 %v950
      %v952 = vpop.xlane.xlu0 %951
      %v953 = vsel %vm946, %v713, -inf
      %954 = vmax.xlane.f32.xlu0 %v953
      %v955 = vpop.xlane.xlu0 %954
      %v956 = vsel %vm946, %v715, -inf
      %957 = vmax.xlane.f32.xlu0 %v956
      %v958 = vpop.xlane.xlu0 %957
      %v959 = vsel %vm946, %v718, -inf
      %960 = vmax.xlane.f32.xlu0 %v959
      %v961 = vpop.xlane.xlu0 %960
      %v962 = vsel %vm946, %v720, -inf
      %963 = vmax.xlane.f32.xlu0 %v962
      %v964 = vpop.xlane.xlu0 %963
      %v965 = vsel %vm946, %v723, -inf
      %966 = vmax.xlane.f32.xlu0 %v965
      %v967 = vpop.xlane.xlu0 %966
      %v968 = vsel %vm946, %v725, -inf
      %969 = vmax.xlane.f32.xlu0 %v968
      %v970 = vpop.xlane.xlu0 %969
      %v971 = vsel %vm946, %v781, -inf
      %972 = vmax.xlane.f32.xlu0 %v971
      %v973 = vpop.xlane.xlu0 %972
      %v974 = vsel %vm946, %v783, -inf
      %975 = vmax.xlane.f32.xlu0 %v974
      %v976 = vpop.xlane.xlu0 %975
      %v977 = vsel %vm946, %v786, -inf
      %978 = vmax.xlane.f32.xlu0 %v977
      %v979 = vpop.xlane.xlu0 %978
      %v980 = vsel %vm946, %v788, -inf
      %981 = vmax.xlane.f32.xlu0 %v980
      %v982 = vpop.xlane.xlu0 %981
      %v983 = vsel %vm946, %v791, -inf
      %984 = vmax.xlane.f32.xlu0 %v983
      %v985 = vpop.xlane.xlu0 %984
      %v986 = vsel %vm946, %v793, -inf
      %987 = vmax.xlane.f32.xlu0 %v986
      %v988 = vpop.xlane.xlu0 %987
      %v989 = vsel %vm946, %v796, -inf
      %990 = vmax.xlane.f32.xlu0 %v989
      %v991 = vpop.xlane.xlu0 %990
      %v992 = vsel %vm946, %v798, -inf
      %993 = vmax.xlane.f32.xlu0 %v992
      %v994 = vpop.xlane.xlu0 %993
      %v995 = vsel %vm946, %v854, -inf
      %996 = vmax.xlane.f32.xlu0 %v995
      %v997 = vpop.xlane.xlu0 %996
      %v998 = vsel %vm946, %v856, -inf
      %999 = vmax.xlane.f32.xlu0 %v998
      %v1000 = vpop.xlane.xlu0 %999
      %v1001 = vsel %vm946, %v859, -inf
      %1002 = vmax.xlane.f32.xlu0 %v1001
      %v1003 = vpop.xlane.xlu0 %1002
      %v1004 = vsel %vm946, %v861, -inf
      %1005 = vmax.xlane.f32.xlu0 %v1004
      %v1006 = vpop.xlane.xlu0 %1005
      %v1007 = vsel %vm946, %v864, -inf
      %1008 = vmax.xlane.f32.xlu0 %v1007
      %v1009 = vpop.xlane.xlu0 %1008
      %v1010 = vsel %vm946, %v866, -inf
      %1011 = vmax.xlane.f32.xlu0 %v1010
      %v1012 = vpop.xlane.xlu0 %1011
      %v1013 = vsel %vm946, %v869, -inf
      %1014 = vmax.xlane.f32.xlu0 %v1013
      %v1015 = vpop.xlane.xlu0 %1014
      %v1016 = vsel %vm946, %v871, -inf
      %1017 = vmax.xlane.f32.xlu0 %v1016
      %v1018 = vpop.xlane.xlu0 %1017
      %v1019 = vsel %vm946, %v927, -inf
      %1020 = vmax.xlane.f32.xlu0 %v1019
      %v1021 = vpop.xlane.xlu0 %1020
      %v1022 = vsel %vm946, %v929, -inf
      %1023 = vmax.xlane.f32.xlu0 %v1022
      %v1024 = vpop.xlane.xlu0 %1023
      %v1025 = vsel %vm946, %v932, -inf
      %1026 = vmax.xlane.f32.xlu0 %v1025
      %v1027 = vpop.xlane.xlu0 %1026
      %v1028 = vsel %vm946, %v934, -inf
      %1029 = vmax.xlane.f32.xlu0 %v1028
      %v1030 = vpop.xlane.xlu0 %1029
      %v1031 = vsel %vm946, %v937, -inf
      %1032 = vmax.xlane.f32.xlu0 %v1031
      %v1033 = vpop.xlane.xlu0 %1032
      %v1034 = vsel %vm946, %v939, -inf
      %1035 = vmax.xlane.f32.xlu0 %v1034
      %v1036 = vpop.xlane.xlu0 %1035
      %v1037 = vsel %vm946, %v942, -inf
      %1038 = vmax.xlane.f32.xlu0 %v1037
      %v1039 = vpop.xlane.xlu0 %1038
      %v1040 = vsel %vm946, %v944, -inf
      %1041 = vmax.xlane.f32.xlu0 %v1040
      %v1042 = vpop.xlane.xlu0 %1041
      %v1043 = vsub.f32 %v708, %v949
      %v1044 = vsub.f32 %v710, %v952
      %v1045 = vsub.f32 %v713, %v955
      %v1046 = vsub.f32 %v715, %v958
      %v1047 = vsub.f32 %v718, %v961
      %v1048 = vsub.f32 %v720, %v964
      %v1049 = vsub.f32 %v723, %v967
      %v1050 = vsub.f32 %v725, %v970
      %v1051 = vsub.f32 %v781, %v973
      %v1052 = vsub.f32 %v783, %v976
      %v1053 = vsub.f32 %v786, %v979
      %v1054 = vsub.f32 %v788, %v982
      %v1055 = vsub.f32 %v791, %v985
      %v1056 = vsub.f32 %v793, %v988
      %v1057 = vsub.f32 %v796, %v991
      %v1058 = vsub.f32 %v798, %v994
      %v1059 = vsub.f32 %v854, %v997
      %v1060 = vsub.f32 %v856, %v1000
      %v1061 = vsub.f32 %v859, %v1003
      %v1062 = vsub.f32 %v861, %v1006
      %v1063 = vsub.f32 %v864, %v1009
      %v1064 = vsub.f32 %v866, %v1012
      %v1065 = vsub.f32 %v869, %v1015
      %v1066 = vsub.f32 %v871, %v1018
      %v1067 = vsub.f32 %v927, %v1021
      %v1068 = vsub.f32 %v929, %v1024
      %v1069 = vsub.f32 %v932, %v1027
      %v1070 = vsub.f32 %v934, %v1030
      %v1071 = vsub.f32 %v937, %v1033
      %v1072 = vsub.f32 %v939, %v1036
      %v1073 = vsub.f32 %v942, %v1039
      %v1074 = vsub.f32 %v944, %v1042
      %v1075 = vmul.f32 %v1043, 1.442695
      %v1076 = vpow.pop %v1075
      %v1077 = vmul.f32 %v1044, 1.442695
      %v1078 = vpow.pop %v1077
      %v1079 = vmul.f32 %v1045, 1.442695
      %v1080 = vpow.pop %v1079
      %v1081 = vmul.f32 %v1046, 1.442695
      %v1082 = vpow.pop %v1081
      %v1083 = vmul.f32 %v1047, 1.442695
      %v1084 = vpow.pop %v1083
      %v1085 = vmul.f32 %v1048, 1.442695
      %v1086 = vpow.pop %v1085
      %v1087 = vmul.f32 %v1049, 1.442695
      %v1088 = vpow.pop %v1087
      %v1089 = vmul.f32 %v1050, 1.442695
      %v1090 = vpow.pop %v1089
      %v1091 = vmul.f32 %v1051, 1.442695
      %v1092 = vpow.pop %v1091
      %v1093 = vmul.f32 %v1052, 1.442695
      %v1094 = vpow.pop %v1093
      %v1095 = vmul.f32 %v1053, 1.442695
      %v1096 = vpow.pop %v1095
      %v1097 = vmul.f32 %v1054, 1.442695
      %v1098 = vpow.pop %v1097
      %v1099 = vmul.f32 %v1055, 1.442695
      %v1100 = vpow.pop %v1099
      %v1101 = vmul.f32 %v1056, 1.442695
      %v1102 = vpow.pop %v1101
      %v1103 = vmul.f32 %v1057, 1.442695
      %v1104 = vpow.pop %v1103
      %v1105 = vmul.f32 %v1058, 1.442695
      %v1106 = vpow.pop %v1105
      %v1107 = vmul.f32 %v1059, 1.442695
      %v1108 = vpow.pop %v1107
      %v1109 = vmul.f32 %v1060, 1.442695
      %v1110 = vpow.pop %v1109
      %v1111 = vmul.f32 %v1061, 1.442695
      %v1112 = vpow.pop %v1111
      %v1113 = vmul.f32 %v1062, 1.442695
      %v1114 = vpow.pop %v1113
      %v1115 = vmul.f32 %v1063, 1.442695
      %v1116 = vpow.pop %v1115
      %v1117 = vmul.f32 %v1064, 1.442695
      %v1118 = vpow.pop %v1117
      %v1119 = vmul.f32 %v1065, 1.442695
      %v1120 = vpow.pop %v1119
      %v1121 = vmul.f32 %v1066, 1.442695
      %v1122 = vpow.pop %v1121
      %v1123 = vmul.f32 %v1067, 1.442695
      %v1124 = vpow.pop %v1123
      %v1125 = vmul.f32 %v1068, 1.442695
      %v1126 = vpow.pop %v1125
      %v1127 = vmul.f32 %v1069, 1.442695
      %v1128 = vpow.pop %v1127
      %v1129 = vmul.f32 %v1070, 1.442695
      %v1130 = vpow.pop %v1129
      %v1131 = vmul.f32 %v1071, 1.442695
      %v1132 = vpow.pop %v1131
      %v1133 = vmul.f32 %v1072, 1.442695
      %v1134 = vpow.pop %v1133
      %v1135 = vmul.f32 %v1073, 1.442695
      %v1136 = vpow.pop %v1135
      %v1137 = vmul.f32 %v1074, 1.442695
      %v1138 = vpow.pop %v1137
      %v1139 = vsel %vm946, %v1076, 0.0
      %1140 = vadd.xlane.f32.xlu0 %v1139
      %v1141 = vpop.xlane.xlu0 %1140
      %v1142 = vsel %vm946, %v1078, 0.0
      %1143 = vadd.xlane.f32.xlu0 %v1142
      %v1144 = vpop.xlane.xlu0 %1143
      %v1145 = vsel %vm946, %v1080, 0.0
      %1146 = vadd.xlane.f32.xlu0 %v1145
      %v1147 = vpop.xlane.xlu0 %1146
      %v1148 = vsel %vm946, %v1082, 0.0
      %1149 = vadd.xlane.f32.xlu0 %v1148
      %v1150 = vpop.xlane.xlu0 %1149
      %v1151 = vsel %vm946, %v1084, 0.0
      %1152 = vadd.xlane.f32.xlu0 %v1151
      %v1153 = vpop.xlane.xlu0 %1152
      %v1154 = vsel %vm946, %v1086, 0.0
      %1155 = vadd.xlane.f32.xlu0 %v1154
      %v1156 = vpop.xlane.xlu0 %1155
      %v1157 = vsel %vm946, %v1088, 0.0
      %1158 = vadd.xlane.f32.xlu0 %v1157
      %v1159 = vpop.xlane.xlu0 %1158
      %v1160 = vsel %vm946, %v1090, 0.0
      %1161 = vadd.xlane.f32.xlu0 %v1160
      %v1162 = vpop.xlane.xlu0 %1161
      %v1163 = vsel %vm946, %v1092, 0.0
      %1164 = vadd.xlane.f32.xlu0 %v1163
      %v1165 = vpop.xlane.xlu0 %1164
      %v1166 = vsel %vm946, %v1094, 0.0
      %1167 = vadd.xlane.f32.xlu0 %v1166
      %v1168 = vpop.xlane.xlu0 %1167
      %v1169 = vsel %vm946, %v1096, 0.0
      %1170 = vadd.xlane.f32.xlu0 %v1169
      %v1171 = vpop.xlane.xlu0 %1170
      %v1172 = vsel %vm946, %v1098, 0.0
      %1173 = vadd.xlane.f32.xlu0 %v1172
      %v1174 = vpop.xlane.xlu0 %1173
      %v1175 = vsel %vm946, %v1100, 0.0
      %1176 = vadd.xlane.f32.xlu0 %v1175
      %v1177 = vpop.xlane.xlu0 %1176
      %v1178 = vsel %vm946, %v1102, 0.0
      %1179 = vadd.xlane.f32.xlu0 %v1178
      %v1180 = vpop.xlane.xlu0 %1179
      %v1181 = vsel %vm946, %v1104, 0.0
      %1182 = vadd.xlane.f32.xlu0 %v1181
      %v1183 = vpop.xlane.xlu0 %1182
      %v1184 = vsel %vm946, %v1106, 0.0
      %1185 = vadd.xlane.f32.xlu0 %v1184
      %v1186 = vpop.xlane.xlu0 %1185
      %v1187 = vsel %vm946, %v1108, 0.0
      %1188 = vadd.xlane.f32.xlu0 %v1187
      %v1189 = vpop.xlane.xlu0 %1188
      %v1190 = vsel %vm946, %v1110, 0.0
      %1191 = vadd.xlane.f32.xlu0 %v1190
      %v1192 = vpop.xlane.xlu0 %1191
      %v1193 = vsel %vm946, %v1112, 0.0
      %1194 = vadd.xlane.f32.xlu0 %v1193
      %v1195 = vpop.xlane.xlu0 %1194
      %v1196 = vsel %vm946, %v1114, 0.0
      %1197 = vadd.xlane.f32.xlu0 %v1196
      %v1198 = vpop.xlane.xlu0 %1197
      %v1199 = vsel %vm946, %v1116, 0.0
      %1200 = vadd.xlane.f32.xlu0 %v1199
      %v1201 = vpop.xlane.xlu0 %1200
      %v1202 = vsel %vm946, %v1118, 0.0
      %1203 = vadd.xlane.f32.xlu0 %v1202
      %v1204 = vpop.xlane.xlu0 %1203
      %v1205 = vsel %vm946, %v1120, 0.0
      %1206 = vadd.xlane.f32.xlu0 %v1205
      %v1207 = vpop.xlane.xlu0 %1206
      %v1208 = vsel %vm946, %v1122, 0.0
      %1209 = vadd.xlane.f32.xlu0 %v1208
      %v1210 = vpop.xlane.xlu0 %1209
      %v1211 = vsel %vm946, %v1124, 0.0
      %1212 = vadd.xlane.f32.xlu0 %v1211
      %v1213 = vpop.xlane.xlu0 %1212
      %v1214 = vsel %vm946, %v1126, 0.0
      %1215 = vadd.xlane.f32.xlu0 %v1214
      %v1216 = vpop.xlane.xlu0 %1215
      %v1217 = vsel %vm946, %v1128, 0.0
      %1218 = vadd.xlane.f32.xlu0 %v1217
      %v1219 = vpop.xlane.xlu0 %1218
      %v1220 = vsel %vm946, %v1130, 0.0
      %1221 = vadd.xlane.f32.xlu0 %v1220
      %v1222 = vpop.xlane.xlu0 %1221
      %v1223 = vsel %vm946, %v1132, 0.0
      %1224 = vadd.xlane.f32.xlu0 %v1223
      %v1225 = vpop.xlane.xlu0 %1224
      %v1226 = vsel %vm946, %v1134, 0.0
      %1227 = vadd.xlane.f32.xlu0 %v1226
      %v1228 = vpop.xlane.xlu0 %1227
      %v1229 = vsel %vm946, %v1136, 0.0
      %1230 = vadd.xlane.f32.xlu0 %v1229
      %v1231 = vpop.xlane.xlu0 %1230
      %v1232 = vsel %vm946, %v1138, 0.0
      %1233 = vadd.xlane.f32.xlu0 %v1232
      %v1234 = vpop.xlane.xlu0 %1233
      %v1235 = vpack.c.bf16 %v1076, %v1076
      %v1236 = vpack.c.bf16 %v1078, %v1078
      %v1237 = vpack.c.bf16 %v1080, %v1080
      %v1238 = vpack.c.bf16 %v1082, %v1082
      %v1239 = vpack.c.bf16 %v1084, %v1084
      %v1240 = vpack.c.bf16 %v1086, %v1086
      %v1241 = vpack.c.bf16 %v1088, %v1088
      %v1242 = vpack.c.bf16 %v1090, %v1090
      %v1243 = vpack.c.bf16 %v1092, %v1092
      %v1244 = vpack.c.bf16 %v1094, %v1094
      %v1245 = vpack.c.bf16 %v1096, %v1096
      %v1246 = vpack.c.bf16 %v1098, %v1098
      %v1247 = vpack.c.bf16 %v1100, %v1100
      %v1248 = vpack.c.bf16 %v1102, %v1102
      %v1249 = vpack.c.bf16 %v1104, %v1104
      %v1250 = vpack.c.bf16 %v1106, %v1106
      %v1251 = vpack.c.bf16 %v1108, %v1108
      %v1252 = vpack.c.bf16 %v1110, %v1110
      %v1253 = vpack.c.bf16 %v1112, %v1112
      %v1254 = vpack.c.bf16 %v1114, %v1114
      %v1255 = vpack.c.bf16 %v1116, %v1116
      %v1256 = vpack.c.bf16 %v1118, %v1118
      %v1257 = vpack.c.bf16 %v1120, %v1120
      %v1258 = vpack.c.bf16 %v1122, %v1122
      %v1259 = vpack.c.bf16 %v1124, %v1124
      %v1260 = vpack.c.bf16 %v1126, %v1126
      %v1261 = vpack.c.bf16 %v1128, %v1128
      %v1262 = vpack.c.bf16 %v1130, %v1130
      %v1263 = vpack.c.bf16 %v1132, %v1132
      %v1264 = vpack.c.bf16 %v1134, %v1134
      %v1265 = vpack.c.bf16 %v1136, %v1136
      %v1266 = vpack.c.bf16 %v1138, %v1138
      %v1275 = vunpack.c.l.b16 %v1235
      %v1276 = vunpack.c.l.b16 %v1236
      %v1277 = vunpack.c.l.b16 %v1237
      %v1278 = vunpack.c.l.b16 %v1238
      %v1279 = vunpack.c.l.b16 %v1239
      %v1280 = vunpack.c.l.b16 %v1240
      %v1281 = vunpack.c.l.b16 %v1241
      %v1282 = vunpack.c.l.b16 %v1242
      %v1283 = vpack.c.b16 %v1276, %v1275
      %v1284 = vpack.c.b16 %v1278, %v1277
      %v1285 = vpack.c.b16 %v1280, %v1279
      %v1286 = vpack.c.b16 %v1282, %v1281
      %1287 = vrot.lane.b32.xlu0 %v661, 64
      %v1288 = vpop.permute.xlu0 %1287
      %1289 = vrot.lane.b32.xlu0 %v662, 64
      %v1290 = vpop.permute.xlu0 %1289
      %1291 = vrot.lane.b32.xlu0 %v663, 64
      %v1292 = vpop.permute.xlu0 %1291
      %1293 = vrot.lane.b32.xlu0 %v664, 64
      %v1294 = vpop.permute.xlu0 %1293
      %v1300 = vsel %vm946, %v1283, 0
      %v1303 = vsel %vm946, %v1284, 0
      %v1306 = vsel %vm946, %v1285, 0
      %v1309 = vsel %vm946, %v1286, 0
      %1311 = vmatpush.bf16.msra.mxu0 0
      %1312 = vmatpush.bf16.msra.mxu0 0
      %1313 = vmatpush.bf16.msra.mxu0 0
      %1314 = vmatpush.bf16.msra.mxu0 0
      %1315 = vmatpush.bf16.msra.mxu0 %v1294
      %1316 = vmatpush.bf16.msra.mxu0 %v1292
      %1317 = vmatpush.bf16.msra.mxu0 %v1290
      %1318 = vmatpush.bf16.msra.mxu0 %v1288
      %1319 = vmatmul.bf16.gmra.mxu0 %v1300
      %v1320 = vpop.f32.mrf.mxu0
      %v1321 = vadd.f32 0.0, %v1320
      %v1322 = vpop.f32.mrf.mxu0
      %v1323 = vadd.f32 0.0, %v1322
      %1324 = vmatmul.bf16.gmra.mxu0 %v1303
      %v1325 = vpop.f32.mrf.mxu0
      %v1326 = vadd.f32 0.0, %v1325
      %v1327 = vpop.f32.mrf.mxu0
      %v1328 = vadd.f32 0.0, %v1327
      %1329 = vmatmul.bf16.gmra.mxu0 %v1306
      %v1330 = vpop.f32.mrf.mxu0
      %v1331 = vadd.f32 0.0, %v1330
      %v1332 = vpop.f32.mrf.mxu0
      %v1333 = vadd.f32 0.0, %v1332
      %1334 = vmatmul.bf16.gmra.mxu0 %v1309
      %v1335 = vpop.f32.mrf.mxu0
      %v1336 = vadd.f32 0.0, %v1335
      %v1337 = vpop.f32.mrf.mxu0
      %v1338 = vadd.f32 0.0, %v1337
      %1339 = vdwg.mxu0
      %v1348 = vunpack.c.l.b16 %v1243
      %v1349 = vunpack.c.l.b16 %v1244
      %v1350 = vunpack.c.l.b16 %v1245
      %v1351 = vunpack.c.l.b16 %v1246
      %v1352 = vunpack.c.l.b16 %v1247
      %v1353 = vunpack.c.l.b16 %v1248
      %v1354 = vunpack.c.l.b16 %v1249
      %v1355 = vunpack.c.l.b16 %v1250
      %v1356 = vpack.c.b16 %v1349, %v1348
      %v1357 = vpack.c.b16 %v1351, %v1350
      %v1358 = vpack.c.b16 %v1353, %v1352
      %v1359 = vpack.c.b16 %v1355, %v1354
      %1360 = vrot.lane.b32.xlu0 %v735, 64
      %v1361 = vpop.permute.xlu0 %1360
      %1362 = vrot.lane.b32.xlu0 %v736, 64
      %v1363 = vpop.permute.xlu0 %1362
      %1364 = vrot.lane.b32.xlu0 %v737, 64
      %v1365 = vpop.permute.xlu0 %1364
      %1366 = vrot.lane.b32.xlu0 %v738, 64
      %v1367 = vpop.permute.xlu0 %1366
      %v1373 = vsel %vm946, %v1356, 0
      %v1376 = vsel %vm946, %v1357, 0
      %v1379 = vsel %vm946, %v1358, 0
      %v1382 = vsel %vm946, %v1359, 0
      %1384 = vmatpush.bf16.msra.mxu0 0
      %1385 = vmatpush.bf16.msra.mxu0 0
      %1386 = vmatpush.bf16.msra.mxu0 0
      %1387 = vmatpush.bf16.msra.mxu0 0
      %1388 = vmatpush.bf16.msra.mxu0 %v1367
      %1389 = vmatpush.bf16.msra.mxu0 %v1365
      %1390 = vmatpush.bf16.msra.mxu0 %v1363
      %1391 = vmatpush.bf16.msra.mxu0 %v1361
      %1392 = vmatmul.bf16.gmra.mxu0 %v1373
      %v1393 = vpop.f32.mrf.mxu0
      %v1394 = vadd.f32 0.0, %v1393
      %v1395 = vpop.f32.mrf.mxu0
      %v1396 = vadd.f32 0.0, %v1395
      %1397 = vmatmul.bf16.gmra.mxu0 %v1376
      %v1398 = vpop.f32.mrf.mxu0
      %v1399 = vadd.f32 0.0, %v1398
      %v1400 = vpop.f32.mrf.mxu0
      %v1401 = vadd.f32 0.0, %v1400
      %1402 = vmatmul.bf16.gmra.mxu0 %v1379
      %v1403 = vpop.f32.mrf.mxu0
      %v1404 = vadd.f32 0.0, %v1403
      %v1405 = vpop.f32.mrf.mxu0
      %v1406 = vadd.f32 0.0, %v1405
      %1407 = vmatmul.bf16.gmra.mxu0 %v1382
      %v1408 = vpop.f32.mrf.mxu0
      %v1409 = vadd.f32 0.0, %v1408
      %v1410 = vpop.f32.mrf.mxu0
      %v1411 = vadd.f32 0.0, %v1410
      %1412 = vdwg.mxu0
      %v1421 = vunpack.c.l.b16 %v1251
      %v1422 = vunpack.c.l.b16 %v1252
      %v1423 = vunpack.c.l.b16 %v1253
      %v1424 = vunpack.c.l.b16 %v1254
      %v1425 = vunpack.c.l.b16 %v1255
      %v1426 = vunpack.c.l.b16 %v1256
      %v1427 = vunpack.c.l.b16 %v1257
      %v1428 = vunpack.c.l.b16 %v1258
      %v1429 = vpack.c.b16 %v1422, %v1421
      %v1430 = vpack.c.b16 %v1424, %v1423
      %v1431 = vpack.c.b16 %v1426, %v1425
      %v1432 = vpack.c.b16 %v1428, %v1427
      %1433 = vrot.lane.b32.xlu0 %v808, 64
      %v1434 = vpop.permute.xlu0 %1433
      %1435 = vrot.lane.b32.xlu0 %v809, 64
      %v1436 = vpop.permute.xlu0 %1435
      %1437 = vrot.lane.b32.xlu0 %v810, 64
      %v1438 = vpop.permute.xlu0 %1437
      %1439 = vrot.lane.b32.xlu0 %v811, 64
      %v1440 = vpop.permute.xlu0 %1439
      %v1446 = vsel %vm946, %v1429, 0
      %v1449 = vsel %vm946, %v1430, 0
      %v1452 = vsel %vm946, %v1431, 0
      %v1455 = vsel %vm946, %v1432, 0
      %1457 = vmatpush.bf16.msra.mxu0 0
      %1458 = vmatpush.bf16.msra.mxu0 0
      %1459 = vmatpush.bf16.msra.mxu0 0
      %1460 = vmatpush.bf16.msra.mxu0 0
      %1461 = vmatpush.bf16.msra.mxu0 %v1440
      %1462 = vmatpush.bf16.msra.mxu0 %v1438
      %1463 = vmatpush.bf16.msra.mxu0 %v1436
      %1464 = vmatpush.bf16.msra.mxu0 %v1434
      %1465 = vmatmul.bf16.gmra.mxu0 %v1446
      %v1466 = vpop.f32.mrf.mxu0
      %v1467 = vadd.f32 0.0, %v1466
      %v1468 = vpop.f32.mrf.mxu0
      %v1469 = vadd.f32 0.0, %v1468
      %1470 = vmatmul.bf16.gmra.mxu0 %v1449
      %v1471 = vpop.f32.mrf.mxu0
      %v1472 = vadd.f32 0.0, %v1471
      %v1473 = vpop.f32.mrf.mxu0
      %v1474 = vadd.f32 0.0, %v1473
      %1475 = vmatmul.bf16.gmra.mxu0 %v1452
      %v1476 = vpop.f32.mrf.mxu0
      %v1477 = vadd.f32 0.0, %v1476
      %v1478 = vpop.f32.mrf.mxu0
      %v1479 = vadd.f32 0.0, %v1478
      %1480 = vmatmul.bf16.gmra.mxu0 %v1455
      %v1481 = vpop.f32.mrf.mxu0
      %v1482 = vadd.f32 0.0, %v1481
      %v1483 = vpop.f32.mrf.mxu0
      %v1484 = vadd.f32 0.0, %v1483
      %1485 = vdwg.mxu0
      %v1494 = vunpack.c.l.b16 %v1259
      %v1495 = vunpack.c.l.b16 %v1260
      %v1496 = vunpack.c.l.b16 %v1261
      %v1497 = vunpack.c.l.b16 %v1262
      %v1498 = vunpack.c.l.b16 %v1263
      %v1499 = vunpack.c.l.b16 %v1264
      %v1500 = vunpack.c.l.b16 %v1265
      %v1501 = vunpack.c.l.b16 %v1266
      %v1502 = vpack.c.b16 %v1495, %v1494
      %v1503 = vpack.c.b16 %v1497, %v1496
      %v1504 = vpack.c.b16 %v1499, %v1498
      %v1505 = vpack.c.b16 %v1501, %v1500
      %1506 = vrot.lane.b32.xlu0 %v881, 64
      %v1507 = vpop.permute.xlu0 %1506
      %1508 = vrot.lane.b32.xlu0 %v882, 64
      %v1509 = vpop.permute.xlu0 %1508
      %1510 = vrot.lane.b32.xlu0 %v883, 64
      %v1511 = vpop.permute.xlu0 %1510
      %1512 = vrot.lane.b32.xlu0 %v884, 64
      %v1513 = vpop.permute.xlu0 %1512
      %v1519 = vsel %vm946, %v1502, 0
      %v1522 = vsel %vm946, %v1503, 0
      %v1525 = vsel %vm946, %v1504, 0
      %v1528 = vsel %vm946, %v1505, 0
      %1530 = vmatpush.bf16.msra.mxu0 0
      %1531 = vmatpush.bf16.msra.mxu0 0
      %1532 = vmatpush.bf16.msra.mxu0 0
      %1533 = vmatpush.bf16.msra.mxu0 0
      %1534 = vmatpush.bf16.msra.mxu0 %v1513
      %1535 = vmatpush.bf16.msra.mxu0 %v1511
      %1536 = vmatpush.bf16.msra.mxu0 %v1509
      %1537 = vmatpush.bf16.msra.mxu0 %v1507
      %1538 = vmatmul.bf16.gmra.mxu0 %v1519
      %v1539 = vpop.f32.mrf.mxu0
      %v1540 = vadd.f32 0.0, %v1539
      %v1541 = vpop.f32.mrf.mxu0
      %v1542 = vadd.f32 0.0, %v1541
      %1543 = vmatmul.bf16.gmra.mxu0 %v1522
      %v1544 = vpop.f32.mrf.mxu0
      %v1545 = vadd.f32 0.0, %v1544
      %v1546 = vpop.f32.mrf.mxu0
      %v1547 = vadd.f32 0.0, %v1546
      %1548 = vmatmul.bf16.gmra.mxu0 %v1525
      %v1549 = vpop.f32.mrf.mxu0
      %v1550 = vadd.f32 0.0, %v1549
      %v1551 = vpop.f32.mrf.mxu0
      %v1552 = vadd.f32 0.0, %v1551
      %1553 = vmatmul.bf16.gmra.mxu0 %v1528
      %v1554 = vpop.f32.mrf.mxu0
      %v1555 = vadd.f32 0.0, %v1554
      %v1556 = vpop.f32.mrf.mxu0
      %v1557 = vadd.f32 0.0, %v1556
      %1558 = vdwg.mxu0
      %v1559 = vrcp.pop %v1141
      %v1560 = vrcp.pop %v1144
      %v1561 = vrcp.pop %v1147
      %v1562 = vrcp.pop %v1150
      %v1563 = vrcp.pop %v1153
      %v1564 = vrcp.pop %v1156
      %v1565 = vrcp.pop %v1159
      %v1566 = vrcp.pop %v1162
      %v1567 = vrcp.pop %v1165
      %v1568 = vrcp.pop %v1168
      %v1569 = vrcp.pop %v1171
      %v1570 = vrcp.pop %v1174
      %v1571 = vrcp.pop %v1177
      %v1572 = vrcp.pop %v1180
      %v1573 = vrcp.pop %v1183
      %v1574 = vrcp.pop %v1186
      %v1575 = vrcp.pop %v1189
      %v1576 = vrcp.pop %v1192
      %v1577 = vrcp.pop %v1195
      %v1578 = vrcp.pop %v1198
      %v1579 = vrcp.pop %v1201
      %v1580 = vrcp.pop %v1204
      %v1581 = vrcp.pop %v1207
      %v1582 = vrcp.pop %v1210
      %v1583 = vrcp.pop %v1213
      %v1584 = vrcp.pop %v1216
      %v1585 = vrcp.pop %v1219
      %v1586 = vrcp.pop %v1222
      %v1587 = vrcp.pop %v1225
      %v1588 = vrcp.pop %v1228
      %v1589 = vrcp.pop %v1231
      %v1590 = vrcp.pop %v1234
      %v1591 = vmul.f32 %v1321, %v1559
      %v1592 = vmul.f32 %v1323, %v1560
      %v1593 = vmul.f32 %v1326, %v1561
      %v1594 = vmul.f32 %v1328, %v1562
      %v1595 = vmul.f32 %v1331, %v1563
      %v1596 = vmul.f32 %v1333, %v1564
      %v1597 = vmul.f32 %v1336, %v1565
      %v1598 = vmul.f32 %v1338, %v1566
      %v1599 = vmul.f32 %v1394, %v1567
      %v1600 = vmul.f32 %v1396, %v1568
      %v1601 = vmul.f32 %v1399, %v1569
      %v1602 = vmul.f32 %v1401, %v1570
      %v1603 = vmul.f32 %v1404, %v1571
      %v1604 = vmul.f32 %v1406, %v1572
      %v1605 = vmul.f32 %v1409, %v1573
      %v1606 = vmul.f32 %v1411, %v1574
      %v1607 = vmul.f32 %v1467, %v1575
      %v1608 = vmul.f32 %v1469, %v1576
      %v1609 = vmul.f32 %v1472, %v1577
      %v1610 = vmul.f32 %v1474, %v1578
      %v1611 = vmul.f32 %v1477, %v1579
      %v1612 = vmul.f32 %v1479, %v1580
      %v1613 = vmul.f32 %v1482, %v1581
      %v1614 = vmul.f32 %v1484, %v1582
      %v1615 = vmul.f32 %v1540, %v1583
      %v1616 = vmul.f32 %v1542, %v1584
      %v1617 = vmul.f32 %v1545, %v1585
      %v1618 = vmul.f32 %v1547, %v1586
      %v1619 = vmul.f32 %v1550, %v1587
      %v1620 = vmul.f32 %v1552, %v1588
      %v1621 = vmul.f32 %v1555, %v1589
      %v1622 = vmul.f32 %v1557, %v1590
      %1631 = vrot.lane.b32.xlu0 %v1599, 8
      %v1632 = vpop.permute.xlu0 %1631
      %1633 = vrot.lane.b32.xlu0 %v1600, 8
      %v1634 = vpop.permute.xlu0 %1633
      %1635 = vrot.lane.b32.xlu0 %v1601, 8
      %v1636 = vpop.permute.xlu0 %1635
      %1637 = vrot.lane.b32.xlu0 %v1602, 8
      %v1638 = vpop.permute.xlu0 %1637
      %1639 = vrot.lane.b32.xlu0 %v1603, 8
      %v1640 = vpop.permute.xlu0 %1639
      %1641 = vrot.lane.b32.xlu0 %v1604, 8
      %v1642 = vpop.permute.xlu0 %1641
      %1643 = vrot.lane.b32.xlu0 %v1605, 8
      %v1644 = vpop.permute.xlu0 %1643
      %1645 = vrot.lane.b32.xlu0 %v1606, 8
      %v1646 = vpop.permute.xlu0 %1645
      %1663 = vrot.lane.b32.xlu0 %v1607, 16
      %v1664 = vpop.permute.xlu0 %1663
      %1665 = vrot.lane.b32.xlu0 %v1608, 16
      %v1666 = vpop.permute.xlu0 %1665
      %1667 = vrot.lane.b32.xlu0 %v1609, 16
      %v1668 = vpop.permute.xlu0 %1667
      %1669 = vrot.lane.b32.xlu0 %v1610, 16
      %v1670 = vpop.permute.xlu0 %1669
      %1671 = vrot.lane.b32.xlu0 %v1611, 16
      %v1672 = vpop.permute.xlu0 %1671
      %1673 = vrot.lane.b32.xlu0 %v1612, 16
      %v1674 = vpop.permute.xlu0 %1673
      %1675 = vrot.lane.b32.xlu0 %v1613, 16
      %v1676 = vpop.permute.xlu0 %1675
      %1677 = vrot.lane.b32.xlu0 %v1614, 16
      %v1678 = vpop.permute.xlu0 %1677
      %1695 = vrot.lane.b32.xlu0 %v1615, 24
      %v1696 = vpop.permute.xlu0 %1695
      %1697 = vrot.lane.b32.xlu0 %v1616, 24
      %v1698 = vpop.permute.xlu0 %1697
      %1699 = vrot.lane.b32.xlu0 %v1617, 24
      %v1700 = vpop.permute.xlu0 %1699
      %1701 = vrot.lane.b32.xlu0 %v1618, 24
      %v1702 = vpop.permute.xlu0 %1701
      %1703 = vrot.lane.b32.xlu0 %v1619, 24
      %v1704 = vpop.permute.xlu0 %1703
      %1705 = vrot.lane.b32.xlu0 %v1620, 24
      %v1706 = vpop.permute.xlu0 %1705
      %1707 = vrot.lane.b32.xlu0 %v1621, 24
      %v1708 = vpop.permute.xlu0 %1707
      %1709 = vrot.lane.b32.xlu0 %v1622, 24
      %v1710 = vpop.permute.xlu0 %1709
      %v1719 = vsel %vm673, %v1591, %v1632
      %v1720 = vsel %vm673, %v1592, %v1634
      %v1721 = vsel %vm673, %v1593, %v1636
      %v1722 = vsel %vm673, %v1594, %v1638
      %v1723 = vsel %vm673, %v1595, %v1640
      %v1724 = vsel %vm673, %v1596, %v1642
      %v1725 = vsel %vm673, %v1597, %v1644
      %v1726 = vsel %vm673, %v1598, %v1646
      %vm1727 = vcmask 130048
      %v1728 = vsel %vm1727, %v1719, %v1664
      %v1729 = vsel %vm1727, %v1720, %v1666
      %v1730 = vsel %vm1727, %v1721, %v1668
      %v1731 = vsel %vm1727, %v1722, %v1670
      %v1732 = vsel %vm1727, %v1723, %v1672
      %v1733 = vsel %vm1727, %v1724, %v1674
      %v1734 = vsel %vm1727, %v1725, %v1676
      %v1735 = vsel %vm1727, %v1726, %v1678
      %vm1736 = vcmask 195584
      %v1737 = vsel %vm1736, %v1728, %v1696
      %v1738 = vsel %vm1736, %v1729, %v1698
      %v1739 = vsel %vm1736, %v1730, %v1700
      %v1740 = vsel %vm1736, %v1731, %v1702
      %v1741 = vsel %vm1736, %v1732, %v1704
      %v1742 = vsel %vm1736, %v1733, %v1706
      %v1743 = vsel %vm1736, %v1734, %v1708
      %v1744 = vsel %vm1736, %v1735, %v1710
      %v1745 = vpack.c.bf16 %v1738, %v1737
      %v1746 = vpack.c.bf16 %v1740, %v1739
      %v1747 = vpack.c.bf16 %v1742, %v1741
      %v1748 = vpack.c.bf16 %v1744, %v1743
      %v1749 = vld [vmem:[%s5] sm:$0xf]
      %v1750 = vld [vmem:[%s5 + $0x4] sm:$0xf]
      %v1751 = vld [vmem:[%s5 + $0x8] sm:$0xf]
      %v1752 = vld [vmem:[%s5 + $0xc] sm:$0xf]
      %v1753 = vld [vmem:[%s6] sm:$0x1]
      %v1755 = vperm.slane %v1753, 0
      %v1761 = vunpack.c.l.b16 %v1749
      %v1762 = vunpack.c.l.b16 %v1750
      %v1763 = vunpack.c.l.b16 %v1751
      %v1764 = vunpack.c.l.b16 %v1752
      %v1765 = vpack.c.b16 %v1762, %v1761
      %v1766 = vpack.c.b16 %v1764, %v1763
      %v1770 = vsel %vm316, %v1745, 0
      %v1773 = vsel %vm316, %v1746, 0
      %v1776 = vsel %vm316, %v1747, 0
      %v1779 = vsel %vm316, %v1748, 0
      %1781 = vmatpush.bf16.msra.mxu0 0
      %1782 = vmatpush.bf16.msra.mxu0 0
      %1783 = vmatpush.bf16.msra.mxu0 0
      %1784 = vmatpush.bf16.msra.mxu0 0
      %1785 = vmatpush.bf16.msra.mxu0 0
      %1786 = vmatpush.bf16.msra.mxu0 0
      %1787 = vmatpush.bf16.msra.mxu0 %v1766
      %1788 = vmatpush.bf16.msra.mxu0 %v1765
      %1789 = vmatmul.bf16.gmra.mxu0 %v1770
      %v1790 = vpop.f32.mrf.mxu0
      %v1791 = vadd.f32 %v1755, %v1790
      %v1792 = vpop.f32.mrf.mxu0
      %v1793 = vadd.f32 %v1755, %v1792
      %1794 = vmatmul.bf16.gmra.mxu0 %v1773
      %v1795 = vpop.f32.mrf.mxu0
      %v1796 = vadd.f32 %v1755, %v1795
      %v1797 = vpop.f32.mrf.mxu0
      %v1798 = vadd.f32 %v1755, %v1797
      %1799 = vmatmul.bf16.gmra.mxu0 %v1776
      %v1800 = vpop.f32.mrf.mxu0
      %v1801 = vadd.f32 %v1755, %v1800
      %v1802 = vpop.f32.mrf.mxu0
      %v1803 = vadd.f32 %v1755, %v1802
      %1804 = vmatmul.bf16.gmra.mxu0 %v1779
      %v1805 = vpop.f32.mrf.mxu0
      %v1806 = vadd.f32 %v1755, %v1805
      %v1807 = vpop.f32.mrf.mxu0
      %v1808 = vadd.f32 %v1755, %v1807
      %1809 = vdwg.mxu0
      %v1810 = vadd.f32 %v300, %v1791
      %v1811 = vadd.f32 %v301, %v1793
      %v1812 = vadd.f32 %v302, %v1796
      %v1813 = vadd.f32 %v303, %v1798
      %v1814 = vadd.f32 %v304, %v1801
      %v1815 = vadd.f32 %v305, %v1803
      %v1816 = vadd.f32 %v306, %v1806
      %v1817 = vadd.f32 %v307, %v1808
      %1818 = vxpose.xlu0.b32.start [1/16] %v1810, 128
      %1819 = vxpose.xlu0.b32.cont [2/16] %v1811, 128
      %1820 = vxpose.xlu0.b32.cont [3/16] %v1812, 128
      %1821 = vxpose.xlu0.b32.cont [4/16] %v1813, 128
      %1822 = vxpose.xlu0.b32.cont [5/16] %v1814, 128
      %1823 = vxpose.xlu0.b32.cont [6/16] %v1815, 128
      %1824 = vxpose.xlu0.b32.cont [7/16] %v1816, 128
      %1825 = vxpose.xlu0.b32.cont [8/16] %v1817, 128
      %1826 = vxpose.xlu0.b32.cont [9/16] 0.0, 128
      %1827 = vxpose.xlu0.b32.cont [10/16] 0.0, 128
      %1828 = vxpose.xlu0.b32.cont [11/16] 0.0, 128
      %1829 = vxpose.xlu0.b32.cont [12/16] 0.0, 128
      %1830 = vxpose.xlu0.b32.cont [13/16] 0.0, 128
      %1831 = vxpose.xlu0.b32.cont [14/16] 0.0, 128
      %1832 = vxpose.xlu0.b32.cont [15/16] 0.0, 128
      %1833 = vxpose.xlu0.b32.end [16/16] 0.0, 128
      %v1834 = vpop.trf.xlu0
      %v1835 = vpop.trf.xlu0
      %v1836 = vpop.trf.xlu0
      %v1837 = vpop.trf.xlu0
      %v1838 = vpop.trf.xlu0
      %v1839 = vpop.trf.xlu0
      %v1840 = vpop.trf.xlu0
      %v1841 = vpop.trf.xlu0
      %v1842 = vpop.trf.xlu0
      %v1843 = vpop.trf.xlu0
      %v1844 = vpop.trf.xlu0
      %v1845 = vpop.trf.xlu0
      %v1846 = vpop.trf.xlu0
      %v1847 = vpop.trf.xlu0
      %v1848 = vpop.trf.xlu0
      %v1849 = vpop.trf.xlu0
      %1850 = vst.msk [vmem:[%s278] sm:$0xff] %vm946, %v1834
      %1851 = vst.msk [vmem:[%s278 + $0x8] sm:$0xff] %vm946, %v1835
      %1852 = vst.msk [vmem:[%s278 + $0x10] sm:$0xff] %vm946, %v1836
      %1853 = vst.msk [vmem:[%s278 + $0x18] sm:$0xff] %vm946, %v1837
      %p1854 = scmp.lt.s32.totalorder %s18, 1
      %s1855 = scalar_select %p1854, %s18, 1
      %s1856 = smul.addr %s1855, 4
      %s1857 = smul.addr %s1856, 8
      %s1858 = scalar_lea.vmem %s7, %s1857
      // Predicated region
      $region49: #{self_attention.1} parent=47 // pred_check
        %p1859 = pneg %p188
      $region50: #{self_attention.1} parent=47 // pred_check_branch
        %1861 = sbr.rel (%p1859) target = $region52
      $region51: #{self_attention.1} parent=47 // pred_region
        _
      $region52: #{self_attention.1} parent=47 // pred_fallthru
        _
    $region48: #{self_attention.1} parent=5 // pred_fallthru
      _
    %p1862 = scmp.le.s32.totalorder 2, %s13
    // Predicated region
    $region53: #{self_attention.1} parent=5 // pred_check
      %p1863 = pneg %p1862
    $region54: #{self_attention.1} parent=5 // pred_check_branch
      %1865 = sbr.rel (%p1863) target = $region56
    $region55: #{self_attention.1} parent=5 // pred_region
      %s1866 = ssub.s32 %s13, 2
      // Predicated region
      $region57: #{self_attention.1} parent=55 // pred_check
        %p1867 = pneg %p194
      $region58: #{self_attention.1} parent=55 // pred_check_branch
        %1869 = sbr.rel (%p1867) target = $region60
      $region59: #{self_attention.1} parent=55 // pred_region
        %p1870 = scmp.lt.s32.totalorder %s19, 1
        %s1871 = scalar_select %p1870, %s19, 1
        %s1872 = smul.addr %s1871, 4
        %s1873 = smul.addr %s1872, 8
        %s1874 = scalar_lea.vmem %s7, %s1873
      $region60: #{self_attention.1} parent=55 // pred_fallthru
        _
    $region56: #{self_attention.1} parent=5 // pred_fallthru
      _
  $region6: #{self_attention.1} parent=0 // loop_footer
    %s17 = sadd.s32 1, %s13
  $region7: #{self_attention.1} parent=0 // loop_footer_branch
    %12 = sbr.rel target = $region3
  $region8: #{self_attention.1} parent=0 // loop_exit
    _

</llo_original>
